<compile_context>
chip_gen: v5e
topology: v5e:2x2
jax: 0.10.0
libtpu: 0.0.40
codegen_flags: <defaults>
</compile_context>

<pallas_src>
import functools

import jax
import jax.numpy as jnp
from jax.experimental import pallas as pl
from jax.experimental.pallas import tpu as pltpu

LANE = 128               # batch elements per lane row
DEF_BLOCK_ROWS = 256     # default sublane rows per grid step (256*128 elems/tile)

# true layer widths of the PyTorch module: (fan_in, fan_out)
LAYER_DIMS = [(2, 5), (5, 5), (5, 5), (5, 5), (5, 5), (5, 1)]
N_PARAMS = sum(fi * fo + fo for fi, fo in LAYER_DIMS)   # 141


def pinn_kernel(params_ref, x_ref, t_ref, out_ref):
    """Whole MLP forward for one (block_rows, 128) tile of batch elements.

    params_ref : (141,) f32 in SMEM — all weights/biases, packed per layer as
                 w (row-major, (fan_in, fan_out)) followed by b.
    x_ref/t_ref: (block_rows, 128) f32 tiles of collocation points.
    out_ref    : (block_rows, 128) f32 tile of network outputs.
    """
    def sigmoid(z):
        # exact same formula as the reference (EUP exp + VPU add + divide)
        return 1.0 / (1.0 + jnp.exp(-z))

    # "features" are a small Python list of dense (block_rows, 128) vreg slabs.
    h = [x_ref[...].astype(jnp.float32), t_ref[...].astype(jnp.float32)]

    off = 0
    n_layers = len(LAYER_DIMS)
    for li, (fin, fout) in enumerate(LAYER_DIMS):
        w_off = off
        b_off = off + fin * fout
        off = b_off + fout
        new_h = []
        for j in range(fout):
            # z_j = sum_i w[i, j] * h_i + b[j]   (scalar broadcasts from SMEM)
            z = h[0] * params_ref[w_off + j]
            for i in range(1, fin):
                z = z + h[i] * params_ref[w_off + i * fout + j]
            z = z + params_ref[b_off + j]
            if li < n_layers - 1:
                z = sigmoid(z)
            new_h.append(z)
        h = new_h

    out_ref[...] = h[0].astype(out_ref.dtype)


def init_params(key):
    """Deterministic PyTorch-style nn.Linear init: U(-1/sqrt(fan_in), 1/sqrt(fan_in))."""
    params = []
    for (fan_in, fan_out) in LAYER_DIMS:
        key, kw, kb = jax.random.split(key, 3)
        bound = 1.0 / jnp.sqrt(float(fan_in))
        # store weights as (in, out) so the math is h @ W
        w = jax.random.uniform(kw, (fan_in, fan_out), jnp.float32, -bound, bound)
        b = jax.random.uniform(kb, (fan_out,), jnp.float32, -bound, bound)
        params.append((w, b))
    return params


def pack_params(params):
    """Flatten all weights/biases into one 1-D f32 array (lives in SMEM)."""
    flat = []
    for (w, b) in params:
        flat.append(w.reshape(-1).astype(jnp.float32))
        flat.append(b.reshape(-1).astype(jnp.float32))
    return jnp.concatenate(flat)


@functools.partial(jax.jit, static_argnames=("block_rows",))
def pinn_forward(x, t, packed_params, block_rows=DEF_BLOCK_ROWS):
    n = x.shape[0]

    r = pl.cdiv(n, LANE)                 # sublane rows needed for the batch
    br = block_rows
    if r <= br:                          # small batch: single 8-aligned tile
        br = max(8, pl.cdiv(r, 8) * 8)
    r_pad = pl.cdiv(r, br) * br
    n_pad = r_pad * LANE

    def to_slab(v):
        flat = jnp.zeros((n_pad,), jnp.float32).at[:n].set(
            v.reshape(-1).astype(jnp.float32))
        return flat.reshape(r_pad, LANE)

    xs = to_slab(x)
    ts = to_slab(t)

    grid = (r_pad // br,)
    tile_spec = pl.BlockSpec((br, LANE), lambda i: (i, 0))

    out = pl.pallas_call(
        pinn_kernel,
        out_shape=jax.ShapeDtypeStruct((r_pad, LANE), jnp.float32),
        grid_spec=pltpu.PrefetchScalarGridSpec(
            num_scalar_prefetch=0,
            grid=grid,
            in_specs=[
                pl.BlockSpec(memory_space=pltpu.MemorySpace.SMEM),  # packed params
                tile_spec,                                          # x slab
                tile_spec,                                          # t slab
            ],
            out_specs=tile_spec,
        ),
        compiler_params=pltpu.CompilerParams(
            dimension_semantics=("parallel",)),
    )(packed_params, xs, ts)

    return out.reshape(n_pad)[:n].reshape(n, 1)


def pinn_reference(x, t, params):
    h = jnp.concatenate([x, t], axis=1).astype(jnp.float32)
    for i, (w, b) in enumerate(params):
        h = jnp.dot(h, w, precision=jax.lax.Precision.HIGHEST) + b
        if i < len(params) - 1:
            h = 1.0 / (1.0 + jnp.exp(-h))
    return h


if __name__ == "__main__":
    key = jax.random.PRNGKey(0)
    kx, kt, kp = jax.random.split(key, 3)

    N = 2000                                           # small, non-multiple of 128
    x = jax.random.uniform(kx, (N, 1), jnp.float32)    # collocation points
    t = jax.random.uniform(kt, (N, 1), jnp.float32)

    params = init_params(kp)
    packed = pack_params(params)
    assert packed.shape == (N_PARAMS,)

    ref = pinn_reference(x, t, params)

    # default (single-tile) path
    out = jax.block_until_ready(pinn_forward(x, t, packed))
    assert out.shape == (N, 1)
    assert jnp.allclose(out, ref, atol=1e-5, rtol=1e-5)

    # multi-step grid path (2 grid steps) to exercise tiling / megacore split
    out2 = jax.block_until_ready(pinn_forward(x, t, packed, block_rows=8))
    assert jnp.allclose(out2, ref, atol=1e-5, rtol=1e-5)

    print("KERNEL_OK")
</pallas_src>

<mosaic_0001>
module attributes {stable_mosaic.version = 11 : i64} {
  func.func @pinn_kernel(%arg0: i32, %arg1: memref<141xf32, #tpu.memory_space<smem>>, %arg2: memref<16x128xf32, #tpu.memory_space<vmem>>, %arg3: memref<16x128xf32, #tpu.memory_space<vmem>>, %arg4: memref<16x128xf32, #tpu.memory_space<vmem>>) attributes {dimension_semantics = [#tpu.dimension_semantics<parallel>], iteration_bounds = array<i64: 1>, scalar_prefetch = 0 : i64, scratch_operands = 0 : i64, tpu.core_type = #tpu.core_type<tc>, window_params = [{transform_indices = @transform_0, window_bounds = array<i64: 141>}, {transform_indices = @transform_1, window_bounds = array<i64: 16, 128>}, {transform_indices = @transform_2, window_bounds = array<i64: 16, 128>}, {transform_indices = @transform_3, window_bounds = array<i64: 16, 128>}]} {
    %c0 = arith.constant 0 : index
    %c0_0 = arith.constant 0 : index
    %0 = vector.load %arg2[%c0, %c0_0] : memref<16x128xf32, #tpu.memory_space<vmem>>, vector<16x128xf32>
    %c0_1 = arith.constant 0 : index
    %c0_2 = arith.constant 0 : index
    %1 = vector.load %arg3[%c0_1, %c0_2] : memref<16x128xf32, #tpu.memory_space<vmem>>, vector<16x128xf32>
    %c0_3 = arith.constant 0 : index
    %2 = memref.load %arg1[%c0_3] : memref<141xf32, #tpu.memory_space<smem>>
    %3 = vector.broadcast %2 : f32 to vector<16x128xf32>
    %4 = arith.mulf %0, %3 : vector<16x128xf32>
    %c5 = arith.constant 5 : index
    %5 = memref.load %arg1[%c5] : memref<141xf32, #tpu.memory_space<smem>>
    %6 = vector.broadcast %5 : f32 to vector<16x128xf32>
    %7 = arith.mulf %1, %6 : vector<16x128xf32>
    %8 = arith.addf %4, %7 : vector<16x128xf32>
    %c10 = arith.constant 10 : index
    %9 = memref.load %arg1[%c10] : memref<141xf32, #tpu.memory_space<smem>>
    %10 = vector.broadcast %9 : f32 to vector<16x128xf32>
    %11 = arith.addf %8, %10 : vector<16x128xf32>
    %cst = arith.constant 0.000000e+00 : f32
    %12 = vector.broadcast %cst : f32 to vector<16x128xf32>
    %13 = arith.subf %12, %11 : vector<16x128xf32>
    %14 = math.exp %13 : vector<16x128xf32>
    %cst_4 = arith.constant 1.000000e+00 : f32
    %15 = vector.broadcast %cst_4 : f32 to vector<16x128xf32>
    %16 = arith.addf %15, %14 : vector<16x128xf32>
    %cst_5 = arith.constant 1.000000e+00 : f32
    %17 = vector.broadcast %cst_5 : f32 to vector<16x128xf32>
    %18 = arith.divf %17, %16 : vector<16x128xf32>
    %c1 = arith.constant 1 : index
    %19 = memref.load %arg1[%c1] : memref<141xf32, #tpu.memory_space<smem>>
    %20 = vector.broadcast %19 : f32 to vector<16x128xf32>
    %21 = arith.mulf %0, %20 : vector<16x128xf32>
    %c6 = arith.constant 6 : index
    %22 = memref.load %arg1[%c6] : memref<141xf32, #tpu.memory_space<smem>>
    %23 = vector.broadcast %22 : f32 to vector<16x128xf32>
    %24 = arith.mulf %1, %23 : vector<16x128xf32>
    %25 = arith.addf %21, %24 : vector<16x128xf32>
    %c11 = arith.constant 11 : index
    %26 = memref.load %arg1[%c11] : memref<141xf32, #tpu.memory_space<smem>>
    %27 = vector.broadcast %26 : f32 to vector<16x128xf32>
    %28 = arith.addf %25, %27 : vector<16x128xf32>
    %cst_6 = arith.constant 0.000000e+00 : f32
    %29 = vector.broadcast %cst_6 : f32 to vector<16x128xf32>
    %30 = arith.subf %29, %28 : vector<16x128xf32>
    %31 = math.exp %30 : vector<16x128xf32>
    %cst_7 = arith.constant 1.000000e+00 : f32
    %32 = vector.broadcast %cst_7 : f32 to vector<16x128xf32>
    %33 = arith.addf %32, %31 : vector<16x128xf32>
    %cst_8 = arith.constant 1.000000e+00 : f32
    %34 = vector.broadcast %cst_8 : f32 to vector<16x128xf32>
    %35 = arith.divf %34, %33 : vector<16x128xf32>
    %c2 = arith.constant 2 : index
    %36 = memref.load %arg1[%c2] : memref<141xf32, #tpu.memory_space<smem>>
    %37 = vector.broadcast %36 : f32 to vector<16x128xf32>
    %38 = arith.mulf %0, %37 : vector<16x128xf32>
    %c7 = arith.constant 7 : index
    %39 = memref.load %arg1[%c7] : memref<141xf32, #tpu.memory_space<smem>>
    %40 = vector.broadcast %39 : f32 to vector<16x128xf32>
    %41 = arith.mulf %1, %40 : vector<16x128xf32>
    %42 = arith.addf %38, %41 : vector<16x128xf32>
    %c12 = arith.constant 12 : index
    %43 = memref.load %arg1[%c12] : memref<141xf32, #tpu.memory_space<smem>>
    %44 = vector.broadcast %43 : f32 to vector<16x128xf32>
    %45 = arith.addf %42, %44 : vector<16x128xf32>
    %cst_9 = arith.constant 0.000000e+00 : f32
    %46 = vector.broadcast %cst_9 : f32 to vector<16x128xf32>
    %47 = arith.subf %46, %45 : vector<16x128xf32>
    %48 = math.exp %47 : vector<16x128xf32>
    %cst_10 = arith.constant 1.000000e+00 : f32
    %49 = vector.broadcast %cst_10 : f32 to vector<16x128xf32>
    %50 = arith.addf %49, %48 : vector<16x128xf32>
    %cst_11 = arith.constant 1.000000e+00 : f32
    %51 = vector.broadcast %cst_11 : f32 to vector<16x128xf32>
    %52 = arith.divf %51, %50 : vector<16x128xf32>
    %c3 = arith.constant 3 : index
    %53 = memref.load %arg1[%c3] : memref<141xf32, #tpu.memory_space<smem>>
    %54 = vector.broadcast %53 : f32 to vector<16x128xf32>
    %55 = arith.mulf %0, %54 : vector<16x128xf32>
    %c8 = arith.constant 8 : index
    %56 = memref.load %arg1[%c8] : memref<141xf32, #tpu.memory_space<smem>>
    %57 = vector.broadcast %56 : f32 to vector<16x128xf32>
    %58 = arith.mulf %1, %57 : vector<16x128xf32>
    %59 = arith.addf %55, %58 : vector<16x128xf32>
    %c13 = arith.constant 13 : index
    %60 = memref.load %arg1[%c13] : memref<141xf32, #tpu.memory_space<smem>>
    %61 = vector.broadcast %60 : f32 to vector<16x128xf32>
    %62 = arith.addf %59, %61 : vector<16x128xf32>
    %cst_12 = arith.constant 0.000000e+00 : f32
    %63 = vector.broadcast %cst_12 : f32 to vector<16x128xf32>
    %64 = arith.subf %63, %62 : vector<16x128xf32>
    %65 = math.exp %64 : vector<16x128xf32>
    %cst_13 = arith.constant 1.000000e+00 : f32
    %66 = vector.broadcast %cst_13 : f32 to vector<16x128xf32>
    %67 = arith.addf %66, %65 : vector<16x128xf32>
    %cst_14 = arith.constant 1.000000e+00 : f32
    %68 = vector.broadcast %cst_14 : f32 to vector<16x128xf32>
    %69 = arith.divf %68, %67 : vector<16x128xf32>
    %c4 = arith.constant 4 : index
    %70 = memref.load %arg1[%c4] : memref<141xf32, #tpu.memory_space<smem>>
    %71 = vector.broadcast %70 : f32 to vector<16x128xf32>
    %72 = arith.mulf %0, %71 : vector<16x128xf32>
    %c9 = arith.constant 9 : index
    %73 = memref.load %arg1[%c9] : memref<141xf32, #tpu.memory_space<smem>>
    %74 = vector.broadcast %73 : f32 to vector<16x128xf32>
    %75 = arith.mulf %1, %74 : vector<16x128xf32>
    %76 = arith.addf %72, %75 : vector<16x128xf32>
    %c14 = arith.constant 14 : index
    %77 = memref.load %arg1[%c14] : memref<141xf32, #tpu.memory_space<smem>>
    %78 = vector.broadcast %77 : f32 to vector<16x128xf32>
    %79 = arith.addf %76, %78 : vector<16x128xf32>
    %cst_15 = arith.constant 0.000000e+00 : f32
    %80 = vector.broadcast %cst_15 : f32 to vector<16x128xf32>
    %81 = arith.subf %80, %79 : vector<16x128xf32>
    %82 = math.exp %81 : vector<16x128xf32>
    %cst_16 = arith.constant 1.000000e+00 : f32
    %83 = vector.broadcast %cst_16 : f32 to vector<16x128xf32>
    %84 = arith.addf %83, %82 : vector<16x128xf32>
    %cst_17 = arith.constant 1.000000e+00 : f32
    %85 = vector.broadcast %cst_17 : f32 to vector<16x128xf32>
    %86 = arith.divf %85, %84 : vector<16x128xf32>
    %c15 = arith.constant 15 : index
    %87 = memref.load %arg1[%c15] : memref<141xf32, #tpu.memory_space<smem>>
    %88 = vector.broadcast %87 : f32 to vector<16x128xf32>
    %89 = arith.mulf %18, %88 : vector<16x128xf32>
    %c20 = arith.constant 20 : index
    %90 = memref.load %arg1[%c20] : memref<141xf32, #tpu.memory_space<smem>>
    %91 = vector.broadcast %90 : f32 to vector<16x128xf32>
    %92 = arith.mulf %35, %91 : vector<16x128xf32>
    %93 = arith.addf %89, %92 : vector<16x128xf32>
    %c25 = arith.constant 25 : index
    %94 = memref.load %arg1[%c25] : memref<141xf32, #tpu.memory_space<smem>>
    %95 = vector.broadcast %94 : f32 to vector<16x128xf32>
    %96 = arith.mulf %52, %95 : vector<16x128xf32>
    %97 = arith.addf %93, %96 : vector<16x128xf32>
    %c30 = arith.constant 30 : index
    %98 = memref.load %arg1[%c30] : memref<141xf32, #tpu.memory_space<smem>>
    %99 = vector.broadcast %98 : f32 to vector<16x128xf32>
    %100 = arith.mulf %69, %99 : vector<16x128xf32>
    %101 = arith.addf %97, %100 : vector<16x128xf32>
    %c35 = arith.constant 35 : index
    %102 = memref.load %arg1[%c35] : memref<141xf32, #tpu.memory_space<smem>>
    %103 = vector.broadcast %102 : f32 to vector<16x128xf32>
    %104 = arith.mulf %86, %103 : vector<16x128xf32>
    %105 = arith.addf %101, %104 : vector<16x128xf32>
    %c40 = arith.constant 40 : index
    %106 = memref.load %arg1[%c40] : memref<141xf32, #tpu.memory_space<smem>>
    %107 = vector.broadcast %106 : f32 to vector<16x128xf32>
    %108 = arith.addf %105, %107 : vector<16x128xf32>
    %cst_18 = arith.constant 0.000000e+00 : f32
    %109 = vector.broadcast %cst_18 : f32 to vector<16x128xf32>
    %110 = arith.subf %109, %108 : vector<16x128xf32>
    %111 = math.exp %110 : vector<16x128xf32>
    %cst_19 = arith.constant 1.000000e+00 : f32
    %112 = vector.broadcast %cst_19 : f32 to vector<16x128xf32>
    %113 = arith.addf %112, %111 : vector<16x128xf32>
    %cst_20 = arith.constant 1.000000e+00 : f32
    %114 = vector.broadcast %cst_20 : f32 to vector<16x128xf32>
    %115 = arith.divf %114, %113 : vector<16x128xf32>
    %c16 = arith.constant 16 : index
    %116 = memref.load %arg1[%c16] : memref<141xf32, #tpu.memory_space<smem>>
    %117 = vector.broadcast %116 : f32 to vector<16x128xf32>
    %118 = arith.mulf %18, %117 : vector<16x128xf32>
    %c21 = arith.constant 21 : index
    %119 = memref.load %arg1[%c21] : memref<141xf32, #tpu.memory_space<smem>>
    %120 = vector.broadcast %119 : f32 to vector<16x128xf32>
    %121 = arith.mulf %35, %120 : vector<16x128xf32>
    %122 = arith.addf %118, %121 : vector<16x128xf32>
    %c26 = arith.constant 26 : index
    %123 = memref.load %arg1[%c26] : memref<141xf32, #tpu.memory_space<smem>>
    %124 = vector.broadcast %123 : f32 to vector<16x128xf32>
    %125 = arith.mulf %52, %124 : vector<16x128xf32>
    %126 = arith.addf %122, %125 : vector<16x128xf32>
    %c31 = arith.constant 31 : index
    %127 = memref.load %arg1[%c31] : memref<141xf32, #tpu.memory_space<smem>>
    %128 = vector.broadcast %127 : f32 to vector<16x128xf32>
    %129 = arith.mulf %69, %128 : vector<16x128xf32>
    %130 = arith.addf %126, %129 : vector<16x128xf32>
    %c36 = arith.constant 36 : index
    %131 = memref.load %arg1[%c36] : memref<141xf32, #tpu.memory_space<smem>>
    %132 = vector.broadcast %131 : f32 to vector<16x128xf32>
    %133 = arith.mulf %86, %132 : vector<16x128xf32>
    %134 = arith.addf %130, %133 : vector<16x128xf32>
    %c41 = arith.constant 41 : index
    %135 = memref.load %arg1[%c41] : memref<141xf32, #tpu.memory_space<smem>>
    %136 = vector.broadcast %135 : f32 to vector<16x128xf32>
    %137 = arith.addf %134, %136 : vector<16x128xf32>
    %cst_21 = arith.constant 0.000000e+00 : f32
    %138 = vector.broadcast %cst_21 : f32 to vector<16x128xf32>
    %139 = arith.subf %138, %137 : vector<16x128xf32>
    %140 = math.exp %139 : vector<16x128xf32>
    %cst_22 = arith.constant 1.000000e+00 : f32
    %141 = vector.broadcast %cst_22 : f32 to vector<16x128xf32>
    %142 = arith.addf %141, %140 : vector<16x128xf32>
    %cst_23 = arith.constant 1.000000e+00 : f32
    %143 = vector.broadcast %cst_23 : f32 to vector<16x128xf32>
    %144 = arith.divf %143, %142 : vector<16x128xf32>
    %c17 = arith.constant 17 : index
    %145 = memref.load %arg1[%c17] : memref<141xf32, #tpu.memory_space<smem>>
    %146 = vector.broadcast %145 : f32 to vector<16x128xf32>
    %147 = arith.mulf %18, %146 : vector<16x128xf32>
    %c22 = arith.constant 22 : index
    %148 = memref.load %arg1[%c22] : memref<141xf32, #tpu.memory_space<smem>>
    %149 = vector.broadcast %148 : f32 to vector<16x128xf32>
    %150 = arith.mulf %35, %149 : vector<16x128xf32>
    %151 = arith.addf %147, %150 : vector<16x128xf32>
    %c27 = arith.constant 27 : index
    %152 = memref.load %arg1[%c27] : memref<141xf32, #tpu.memory_space<smem>>
    %153 = vector.broadcast %152 : f32 to vector<16x128xf32>
    %154 = arith.mulf %52, %153 : vector<16x128xf32>
    %155 = arith.addf %151, %154 : vector<16x128xf32>
    %c32 = arith.constant 32 : index
    %156 = memref.load %arg1[%c32] : memref<141xf32, #tpu.memory_space<smem>>
    %157 = vector.broadcast %156 : f32 to vector<16x128xf32>
    %158 = arith.mulf %69, %157 : vector<16x128xf32>
    %159 = arith.addf %155, %158 : vector<16x128xf32>
    %c37 = arith.constant 37 : index
    %160 = memref.load %arg1[%c37] : memref<141xf32, #tpu.memory_space<smem>>
    %161 = vector.broadcast %160 : f32 to vector<16x128xf32>
    %162 = arith.mulf %86, %161 : vector<16x128xf32>
    %163 = arith.addf %159, %162 : vector<16x128xf32>
    %c42 = arith.constant 42 : index
    %164 = memref.load %arg1[%c42] : memref<141xf32, #tpu.memory_space<smem>>
    %165 = vector.broadcast %164 : f32 to vector<16x128xf32>
    %166 = arith.addf %163, %165 : vector<16x128xf32>
    %cst_24 = arith.constant 0.000000e+00 : f32
    %167 = vector.broadcast %cst_24 : f32 to vector<16x128xf32>
    %168 = arith.subf %167, %166 : vector<16x128xf32>
    %169 = math.exp %168 : vector<16x128xf32>
    %cst_25 = arith.constant 1.000000e+00 : f32
    %170 = vector.broadcast %cst_25 : f32 to vector<16x128xf32>
    %171 = arith.addf %170, %169 : vector<16x128xf32>
    %cst_26 = arith.constant 1.000000e+00 : f32
    %172 = vector.broadcast %cst_26 : f32 to vector<16x128xf32>
    %173 = arith.divf %172, %171 : vector<16x128xf32>
    %c18 = arith.constant 18 : index
    %174 = memref.load %arg1[%c18] : memref<141xf32, #tpu.memory_space<smem>>
    %175 = vector.broadcast %174 : f32 to vector<16x128xf32>
    %176 = arith.mulf %18, %175 : vector<16x128xf32>
    %c23 = arith.constant 23 : index
    %177 = memref.load %arg1[%c23] : memref<141xf32, #tpu.memory_space<smem>>
    %178 = vector.broadcast %177 : f32 to vector<16x128xf32>
    %179 = arith.mulf %35, %178 : vector<16x128xf32>
    %180 = arith.addf %176, %179 : vector<16x128xf32>
    %c28 = arith.constant 28 : index
    %181 = memref.load %arg1[%c28] : memref<141xf32, #tpu.memory_space<smem>>
    %182 = vector.broadcast %181 : f32 to vector<16x128xf32>
    %183 = arith.mulf %52, %182 : vector<16x128xf32>
    %184 = arith.addf %180, %183 : vector<16x128xf32>
    %c33 = arith.constant 33 : index
    %185 = memref.load %arg1[%c33] : memref<141xf32, #tpu.memory_space<smem>>
    %186 = vector.broadcast %185 : f32 to vector<16x128xf32>
    %187 = arith.mulf %69, %186 : vector<16x128xf32>
    %188 = arith.addf %184, %187 : vector<16x128xf32>
    %c38 = arith.constant 38 : index
    %189 = memref.load %arg1[%c38] : memref<141xf32, #tpu.memory_space<smem>>
    %190 = vector.broadcast %189 : f32 to vector<16x128xf32>
    %191 = arith.mulf %86, %190 : vector<16x128xf32>
    %192 = arith.addf %188, %191 : vector<16x128xf32>
    %c43 = arith.constant 43 : index
    %193 = memref.load %arg1[%c43] : memref<141xf32, #tpu.memory_space<smem>>
    %194 = vector.broadcast %193 : f32 to vector<16x128xf32>
    %195 = arith.addf %192, %194 : vector<16x128xf32>
    %cst_27 = arith.constant 0.000000e+00 : f32
    %196 = vector.broadcast %cst_27 : f32 to vector<16x128xf32>
    %197 = arith.subf %196, %195 : vector<16x128xf32>
    %198 = math.exp %197 : vector<16x128xf32>
    %cst_28 = arith.constant 1.000000e+00 : f32
    %199 = vector.broadcast %cst_28 : f32 to vector<16x128xf32>
    %200 = arith.addf %199, %198 : vector<16x128xf32>
    %cst_29 = arith.constant 1.000000e+00 : f32
    %201 = vector.broadcast %cst_29 : f32 to vector<16x128xf32>
    %202 = arith.divf %201, %200 : vector<16x128xf32>
    %c19 = arith.constant 19 : index
    %203 = memref.load %arg1[%c19] : memref<141xf32, #tpu.memory_space<smem>>
    %204 = vector.broadcast %203 : f32 to vector<16x128xf32>
    %205 = arith.mulf %18, %204 : vector<16x128xf32>
    %c24 = arith.constant 24 : index
    %206 = memref.load %arg1[%c24] : memref<141xf32, #tpu.memory_space<smem>>
    %207 = vector.broadcast %206 : f32 to vector<16x128xf32>
    %208 = arith.mulf %35, %207 : vector<16x128xf32>
    %209 = arith.addf %205, %208 : vector<16x128xf32>
    %c29 = arith.constant 29 : index
    %210 = memref.load %arg1[%c29] : memref<141xf32, #tpu.memory_space<smem>>
    %211 = vector.broadcast %210 : f32 to vector<16x128xf32>
    %212 = arith.mulf %52, %211 : vector<16x128xf32>
    %213 = arith.addf %209, %212 : vector<16x128xf32>
    %c34 = arith.constant 34 : index
    %214 = memref.load %arg1[%c34] : memref<141xf32, #tpu.memory_space<smem>>
    %215 = vector.broadcast %214 : f32 to vector<16x128xf32>
    %216 = arith.mulf %69, %215 : vector<16x128xf32>
    %217 = arith.addf %213, %216 : vector<16x128xf32>
    %c39 = arith.constant 39 : index
    %218 = memref.load %arg1[%c39] : memref<141xf32, #tpu.memory_space<smem>>
    %219 = vector.broadcast %218 : f32 to vector<16x128xf32>
    %220 = arith.mulf %86, %219 : vector<16x128xf32>
    %221 = arith.addf %217, %220 : vector<16x128xf32>
    %c44 = arith.constant 44 : index
    %222 = memref.load %arg1[%c44] : memref<141xf32, #tpu.memory_space<smem>>
    %223 = vector.broadcast %222 : f32 to vector<16x128xf32>
    %224 = arith.addf %221, %223 : vector<16x128xf32>
    %cst_30 = arith.constant 0.000000e+00 : f32
    %225 = vector.broadcast %cst_30 : f32 to vector<16x128xf32>
    %226 = arith.subf %225, %224 : vector<16x128xf32>
    %227 = math.exp %226 : vector<16x128xf32>
    %cst_31 = arith.constant 1.000000e+00 : f32
    %228 = vector.broadcast %cst_31 : f32 to vector<16x128xf32>
    %229 = arith.addf %228, %227 : vector<16x128xf32>
    %cst_32 = arith.constant 1.000000e+00 : f32
    %230 = vector.broadcast %cst_32 : f32 to vector<16x128xf32>
    %231 = arith.divf %230, %229 : vector<16x128xf32>
    %c45 = arith.constant 45 : index
    %232 = memref.load %arg1[%c45] : memref<141xf32, #tpu.memory_space<smem>>
    %233 = vector.broadcast %232 : f32 to vector<16x128xf32>
    %234 = arith.mulf %115, %233 : vector<16x128xf32>
    %c50 = arith.constant 50 : index
    %235 = memref.load %arg1[%c50] : memref<141xf32, #tpu.memory_space<smem>>
    %236 = vector.broadcast %235 : f32 to vector<16x128xf32>
    %237 = arith.mulf %144, %236 : vector<16x128xf32>
    %238 = arith.addf %234, %237 : vector<16x128xf32>
    %c55 = arith.constant 55 : index
    %239 = memref.load %arg1[%c55] : memref<141xf32, #tpu.memory_space<smem>>
    %240 = vector.broadcast %239 : f32 to vector<16x128xf32>
    %241 = arith.mulf %173, %240 : vector<16x128xf32>
    %242 = arith.addf %238, %241 : vector<16x128xf32>
    %c60 = arith.constant 60 : index
    %243 = memref.load %arg1[%c60] : memref<141xf32, #tpu.memory_space<smem>>
    %244 = vector.broadcast %243 : f32 to vector<16x128xf32>
    %245 = arith.mulf %202, %244 : vector<16x128xf32>
    %246 = arith.addf %242, %245 : vector<16x128xf32>
    %c65 = arith.constant 65 : index
    %247 = memref.load %arg1[%c65] : memref<141xf32, #tpu.memory_space<smem>>
    %248 = vector.broadcast %247 : f32 to vector<16x128xf32>
    %249 = arith.mulf %231, %248 : vector<16x128xf32>
    %250 = arith.addf %246, %249 : vector<16x128xf32>
    %c70 = arith.constant 70 : index
    %251 = memref.load %arg1[%c70] : memref<141xf32, #tpu.memory_space<smem>>
    %252 = vector.broadcast %251 : f32 to vector<16x128xf32>
    %253 = arith.addf %250, %252 : vector<16x128xf32>
    %cst_33 = arith.constant 0.000000e+00 : f32
    %254 = vector.broadcast %cst_33 : f32 to vector<16x128xf32>
    %255 = arith.subf %254, %253 : vector<16x128xf32>
    %256 = math.exp %255 : vector<16x128xf32>
    %cst_34 = arith.constant 1.000000e+00 : f32
    %257 = vector.broadcast %cst_34 : f32 to vector<16x128xf32>
    %258 = arith.addf %257, %256 : vector<16x128xf32>
    %cst_35 = arith.constant 1.000000e+00 : f32
    %259 = vector.broadcast %cst_35 : f32 to vector<16x128xf32>
    %260 = arith.divf %259, %258 : vector<16x128xf32>
    %c46 = arith.constant 46 : index
    %261 = memref.load %arg1[%c46] : memref<141xf32, #tpu.memory_space<smem>>
    %262 = vector.broadcast %261 : f32 to vector<16x128xf32>
    %263 = arith.mulf %115, %262 : vector<16x128xf32>
    %c51 = arith.constant 51 : index
    %264 = memref.load %arg1[%c51] : memref<141xf32, #tpu.memory_space<smem>>
    %265 = vector.broadcast %264 : f32 to vector<16x128xf32>
    %266 = arith.mulf %144, %265 : vector<16x128xf32>
    %267 = arith.addf %263, %266 : vector<16x128xf32>
    %c56 = arith.constant 56 : index
    %268 = memref.load %arg1[%c56] : memref<141xf32, #tpu.memory_space<smem>>
    %269 = vector.broadcast %268 : f32 to vector<16x128xf32>
    %270 = arith.mulf %173, %269 : vector<16x128xf32>
    %271 = arith.addf %267, %270 : vector<16x128xf32>
    %c61 = arith.constant 61 : index
    %272 = memref.load %arg1[%c61] : memref<141xf32, #tpu.memory_space<smem>>
    %273 = vector.broadcast %272 : f32 to vector<16x128xf32>
    %274 = arith.mulf %202, %273 : vector<16x128xf32>
    %275 = arith.addf %271, %274 : vector<16x128xf32>
    %c66 = arith.constant 66 : index
    %276 = memref.load %arg1[%c66] : memref<141xf32, #tpu.memory_space<smem>>
    %277 = vector.broadcast %276 : f32 to vector<16x128xf32>
    %278 = arith.mulf %231, %277 : vector<16x128xf32>
    %279 = arith.addf %275, %278 : vector<16x128xf32>
    %c71 = arith.constant 71 : index
    %280 = memref.load %arg1[%c71] : memref<141xf32, #tpu.memory_space<smem>>
    %281 = vector.broadcast %280 : f32 to vector<16x128xf32>
    %282 = arith.addf %279, %281 : vector<16x128xf32>
    %cst_36 = arith.constant 0.000000e+00 : f32
    %283 = vector.broadcast %cst_36 : f32 to vector<16x128xf32>
    %284 = arith.subf %283, %282 : vector<16x128xf32>
    %285 = math.exp %284 : vector<16x128xf32>
    %cst_37 = arith.constant 1.000000e+00 : f32
    %286 = vector.broadcast %cst_37 : f32 to vector<16x128xf32>
    %287 = arith.addf %286, %285 : vector<16x128xf32>
    %cst_38 = arith.constant 1.000000e+00 : f32
    %288 = vector.broadcast %cst_38 : f32 to vector<16x128xf32>
    %289 = arith.divf %288, %287 : vector<16x128xf32>
    %c47 = arith.constant 47 : index
    %290 = memref.load %arg1[%c47] : memref<141xf32, #tpu.memory_space<smem>>
    %291 = vector.broadcast %290 : f32 to vector<16x128xf32>
    %292 = arith.mulf %115, %291 : vector<16x128xf32>
    %c52 = arith.constant 52 : index
    %293 = memref.load %arg1[%c52] : memref<141xf32, #tpu.memory_space<smem>>
    %294 = vector.broadcast %293 : f32 to vector<16x128xf32>
    %295 = arith.mulf %144, %294 : vector<16x128xf32>
    %296 = arith.addf %292, %295 : vector<16x128xf32>
    %c57 = arith.constant 57 : index
    %297 = memref.load %arg1[%c57] : memref<141xf32, #tpu.memory_space<smem>>
    %298 = vector.broadcast %297 : f32 to vector<16x128xf32>
    %299 = arith.mulf %173, %298 : vector<16x128xf32>
    %300 = arith.addf %296, %299 : vector<16x128xf32>
    %c62 = arith.constant 62 : index
    %301 = memref.load %arg1[%c62] : memref<141xf32, #tpu.memory_space<smem>>
    %302 = vector.broadcast %301 : f32 to vector<16x128xf32>
    %303 = arith.mulf %202, %302 : vector<16x128xf32>
    %304 = arith.addf %300, %303 : vector<16x128xf32>
    %c67 = arith.constant 67 : index
    %305 = memref.load %arg1[%c67] : memref<141xf32, #tpu.memory_space<smem>>
    %306 = vector.broadcast %305 : f32 to vector<16x128xf32>
    %307 = arith.mulf %231, %306 : vector<16x128xf32>
    %308 = arith.addf %304, %307 : vector<16x128xf32>
    %c72 = arith.constant 72 : index
    %309 = memref.load %arg1[%c72] : memref<141xf32, #tpu.memory_space<smem>>
    %310 = vector.broadcast %309 : f32 to vector<16x128xf32>
    %311 = arith.addf %308, %310 : vector<16x128xf32>
    %cst_39 = arith.constant 0.000000e+00 : f32
    %312 = vector.broadcast %cst_39 : f32 to vector<16x128xf32>
    %313 = arith.subf %312, %311 : vector<16x128xf32>
    %314 = math.exp %313 : vector<16x128xf32>
    %cst_40 = arith.constant 1.000000e+00 : f32
    %315 = vector.broadcast %cst_40 : f32 to vector<16x128xf32>
    %316 = arith.addf %315, %314 : vector<16x128xf32>
    %cst_41 = arith.constant 1.000000e+00 : f32
    %317 = vector.broadcast %cst_41 : f32 to vector<16x128xf32>
    %318 = arith.divf %317, %316 : vector<16x128xf32>
    %c48 = arith.constant 48 : index
    %319 = memref.load %arg1[%c48] : memref<141xf32, #tpu.memory_space<smem>>
    %320 = vector.broadcast %319 : f32 to vector<16x128xf32>
    %321 = arith.mulf %115, %320 : vector<16x128xf32>
    %c53 = arith.constant 53 : index
    %322 = memref.load %arg1[%c53] : memref<141xf32, #tpu.memory_space<smem>>
    %323 = vector.broadcast %322 : f32 to vector<16x128xf32>
    %324 = arith.mulf %144, %323 : vector<16x128xf32>
    %325 = arith.addf %321, %324 : vector<16x128xf32>
    %c58 = arith.constant 58 : index
    %326 = memref.load %arg1[%c58] : memref<141xf32, #tpu.memory_space<smem>>
    %327 = vector.broadcast %326 : f32 to vector<16x128xf32>
    %328 = arith.mulf %173, %327 : vector<16x128xf32>
    %329 = arith.addf %325, %328 : vector<16x128xf32>
    %c63 = arith.constant 63 : index
    %330 = memref.load %arg1[%c63] : memref<141xf32, #tpu.memory_space<smem>>
    %331 = vector.broadcast %330 : f32 to vector<16x128xf32>
    %332 = arith.mulf %202, %331 : vector<16x128xf32>
    %333 = arith.addf %329, %332 : vector<16x128xf32>
    %c68 = arith.constant 68 : index
    %334 = memref.load %arg1[%c68] : memref<141xf32, #tpu.memory_space<smem>>
    %335 = vector.broadcast %334 : f32 to vector<16x128xf32>
    %336 = arith.mulf %231, %335 : vector<16x128xf32>
    %337 = arith.addf %333, %336 : vector<16x128xf32>
    %c73 = arith.constant 73 : index
    %338 = memref.load %arg1[%c73] : memref<141xf32, #tpu.memory_space<smem>>
    %339 = vector.broadcast %338 : f32 to vector<16x128xf32>
    %340 = arith.addf %337, %339 : vector<16x128xf32>
    %cst_42 = arith.constant 0.000000e+00 : f32
    %341 = vector.broadcast %cst_42 : f32 to vector<16x128xf32>
    %342 = arith.subf %341, %340 : vector<16x128xf32>
    %343 = math.exp %342 : vector<16x128xf32>
    %cst_43 = arith.constant 1.000000e+00 : f32
    %344 = vector.broadcast %cst_43 : f32 to vector<16x128xf32>
    %345 = arith.addf %344, %343 : vector<16x128xf32>
    %cst_44 = arith.constant 1.000000e+00 : f32
    %346 = vector.broadcast %cst_44 : f32 to vector<16x128xf32>
    %347 = arith.divf %346, %345 : vector<16x128xf32>
    %c49 = arith.constant 49 : index
    %348 = memref.load %arg1[%c49] : memref<141xf32, #tpu.memory_space<smem>>
    %349 = vector.broadcast %348 : f32 to vector<16x128xf32>
    %350 = arith.mulf %115, %349 : vector<16x128xf32>
    %c54 = arith.constant 54 : index
    %351 = memref.load %arg1[%c54] : memref<141xf32, #tpu.memory_space<smem>>
    %352 = vector.broadcast %351 : f32 to vector<16x128xf32>
    %353 = arith.mulf %144, %352 : vector<16x128xf32>
    %354 = arith.addf %350, %353 : vector<16x128xf32>
    %c59 = arith.constant 59 : index
    %355 = memref.load %arg1[%c59] : memref<141xf32, #tpu.memory_space<smem>>
    %356 = vector.broadcast %355 : f32 to vector<16x128xf32>
    %357 = arith.mulf %173, %356 : vector<16x128xf32>
    %358 = arith.addf %354, %357 : vector<16x128xf32>
    %c64 = arith.constant 64 : index
    %359 = memref.load %arg1[%c64] : memref<141xf32, #tpu.memory_space<smem>>
    %360 = vector.broadcast %359 : f32 to vector<16x128xf32>
    %361 = arith.mulf %202, %360 : vector<16x128xf32>
    %362 = arith.addf %358, %361 : vector<16x128xf32>
    %c69 = arith.constant 69 : index
    %363 = memref.load %arg1[%c69] : memref<141xf32, #tpu.memory_space<smem>>
    %364 = vector.broadcast %363 : f32 to vector<16x128xf32>
    %365 = arith.mulf %231, %364 : vector<16x128xf32>
    %366 = arith.addf %362, %365 : vector<16x128xf32>
    %c74 = arith.constant 74 : index
    %367 = memref.load %arg1[%c74] : memref<141xf32, #tpu.memory_space<smem>>
    %368 = vector.broadcast %367 : f32 to vector<16x128xf32>
    %369 = arith.addf %366, %368 : vector<16x128xf32>
    %cst_45 = arith.constant 0.000000e+00 : f32
    %370 = vector.broadcast %cst_45 : f32 to vector<16x128xf32>
    %371 = arith.subf %370, %369 : vector<16x128xf32>
    %372 = math.exp %371 : vector<16x128xf32>
    %cst_46 = arith.constant 1.000000e+00 : f32
    %373 = vector.broadcast %cst_46 : f32 to vector<16x128xf32>
    %374 = arith.addf %373, %372 : vector<16x128xf32>
    %cst_47 = arith.constant 1.000000e+00 : f32
    %375 = vector.broadcast %cst_47 : f32 to vector<16x128xf32>
    %376 = arith.divf %375, %374 : vector<16x128xf32>
    %c75 = arith.constant 75 : index
    %377 = memref.load %arg1[%c75] : memref<141xf32, #tpu.memory_space<smem>>
    %378 = vector.broadcast %377 : f32 to vector<16x128xf32>
    %379 = arith.mulf %260, %378 : vector<16x128xf32>
    %c80 = arith.constant 80 : index
    %380 = memref.load %arg1[%c80] : memref<141xf32, #tpu.memory_space<smem>>
    %381 = vector.broadcast %380 : f32 to vector<16x128xf32>
    %382 = arith.mulf %289, %381 : vector<16x128xf32>
    %383 = arith.addf %379, %382 : vector<16x128xf32>
    %c85 = arith.constant 85 : index
    %384 = memref.load %arg1[%c85] : memref<141xf32, #tpu.memory_space<smem>>
    %385 = vector.broadcast %384 : f32 to vector<16x128xf32>
    %386 = arith.mulf %318, %385 : vector<16x128xf32>
    %387 = arith.addf %383, %386 : vector<16x128xf32>
    %c90 = arith.constant 90 : index
    %388 = memref.load %arg1[%c90] : memref<141xf32, #tpu.memory_space<smem>>
    %389 = vector.broadcast %388 : f32 to vector<16x128xf32>
    %390 = arith.mulf %347, %389 : vector<16x128xf32>
    %391 = arith.addf %387, %390 : vector<16x128xf32>
    %c95 = arith.constant 95 : index
    %392 = memref.load %arg1[%c95] : memref<141xf32, #tpu.memory_space<smem>>
    %393 = vector.broadcast %392 : f32 to vector<16x128xf32>
    %394 = arith.mulf %376, %393 : vector<16x128xf32>
    %395 = arith.addf %391, %394 : vector<16x128xf32>
    %c100 = arith.constant 100 : index
    %396 = memref.load %arg1[%c100] : memref<141xf32, #tpu.memory_space<smem>>
    %397 = vector.broadcast %396 : f32 to vector<16x128xf32>
    %398 = arith.addf %395, %397 : vector<16x128xf32>
    %cst_48 = arith.constant 0.000000e+00 : f32
    %399 = vector.broadcast %cst_48 : f32 to vector<16x128xf32>
    %400 = arith.subf %399, %398 : vector<16x128xf32>
    %401 = math.exp %400 : vector<16x128xf32>
    %cst_49 = arith.constant 1.000000e+00 : f32
    %402 = vector.broadcast %cst_49 : f32 to vector<16x128xf32>
    %403 = arith.addf %402, %401 : vector<16x128xf32>
    %cst_50 = arith.constant 1.000000e+00 : f32
    %404 = vector.broadcast %cst_50 : f32 to vector<16x128xf32>
    %405 = arith.divf %404, %403 : vector<16x128xf32>
    %c76 = arith.constant 76 : index
    %406 = memref.load %arg1[%c76] : memref<141xf32, #tpu.memory_space<smem>>
    %407 = vector.broadcast %406 : f32 to vector<16x128xf32>
    %408 = arith.mulf %260, %407 : vector<16x128xf32>
    %c81 = arith.constant 81 : index
    %409 = memref.load %arg1[%c81] : memref<141xf32, #tpu.memory_space<smem>>
    %410 = vector.broadcast %409 : f32 to vector<16x128xf32>
    %411 = arith.mulf %289, %410 : vector<16x128xf32>
    %412 = arith.addf %408, %411 : vector<16x128xf32>
    %c86 = arith.constant 86 : index
    %413 = memref.load %arg1[%c86] : memref<141xf32, #tpu.memory_space<smem>>
    %414 = vector.broadcast %413 : f32 to vector<16x128xf32>
    %415 = arith.mulf %318, %414 : vector<16x128xf32>
    %416 = arith.addf %412, %415 : vector<16x128xf32>
    %c91 = arith.constant 91 : index
    %417 = memref.load %arg1[%c91] : memref<141xf32, #tpu.memory_space<smem>>
    %418 = vector.broadcast %417 : f32 to vector<16x128xf32>
    %419 = arith.mulf %347, %418 : vector<16x128xf32>
    %420 = arith.addf %416, %419 : vector<16x128xf32>
    %c96 = arith.constant 96 : index
    %421 = memref.load %arg1[%c96] : memref<141xf32, #tpu.memory_space<smem>>
    %422 = vector.broadcast %421 : f32 to vector<16x128xf32>
    %423 = arith.mulf %376, %422 : vector<16x128xf32>
    %424 = arith.addf %420, %423 : vector<16x128xf32>
    %c101 = arith.constant 101 : index
    %425 = memref.load %arg1[%c101] : memref<141xf32, #tpu.memory_space<smem>>
    %426 = vector.broadcast %425 : f32 to vector<16x128xf32>
    %427 = arith.addf %424, %426 : vector<16x128xf32>
    %cst_51 = arith.constant 0.000000e+00 : f32
    %428 = vector.broadcast %cst_51 : f32 to vector<16x128xf32>
    %429 = arith.subf %428, %427 : vector<16x128xf32>
    %430 = math.exp %429 : vector<16x128xf32>
    %cst_52 = arith.constant 1.000000e+00 : f32
    %431 = vector.broadcast %cst_52 : f32 to vector<16x128xf32>
    %432 = arith.addf %431, %430 : vector<16x128xf32>
    %cst_53 = arith.constant 1.000000e+00 : f32
    %433 = vector.broadcast %cst_53 : f32 to vector<16x128xf32>
    %434 = arith.divf %433, %432 : vector<16x128xf32>
    %c77 = arith.constant 77 : index
    %435 = memref.load %arg1[%c77] : memref<141xf32, #tpu.memory_space<smem>>
    %436 = vector.broadcast %435 : f32 to vector<16x128xf32>
    %437 = arith.mulf %260, %436 : vector<16x128xf32>
    %c82 = arith.constant 82 : index
    %438 = memref.load %arg1[%c82] : memref<141xf32, #tpu.memory_space<smem>>
    %439 = vector.broadcast %438 : f32 to vector<16x128xf32>
    %440 = arith.mulf %289, %439 : vector<16x128xf32>
    %441 = arith.addf %437, %440 : vector<16x128xf32>
    %c87 = arith.constant 87 : index
    %442 = memref.load %arg1[%c87] : memref<141xf32, #tpu.memory_space<smem>>
    %443 = vector.broadcast %442 : f32 to vector<16x128xf32>
    %444 = arith.mulf %318, %443 : vector<16x128xf32>
    %445 = arith.addf %441, %444 : vector<16x128xf32>
    %c92 = arith.constant 92 : index
    %446 = memref.load %arg1[%c92] : memref<141xf32, #tpu.memory_space<smem>>
    %447 = vector.broadcast %446 : f32 to vector<16x128xf32>
    %448 = arith.mulf %347, %447 : vector<16x128xf32>
    %449 = arith.addf %445, %448 : vector<16x128xf32>
    %c97 = arith.constant 97 : index
    %450 = memref.load %arg1[%c97] : memref<141xf32, #tpu.memory_space<smem>>
    %451 = vector.broadcast %450 : f32 to vector<16x128xf32>
    %452 = arith.mulf %376, %451 : vector<16x128xf32>
    %453 = arith.addf %449, %452 : vector<16x128xf32>
    %c102 = arith.constant 102 : index
    %454 = memref.load %arg1[%c102] : memref<141xf32, #tpu.memory_space<smem>>
    %455 = vector.broadcast %454 : f32 to vector<16x128xf32>
    %456 = arith.addf %453, %455 : vector<16x128xf32>
    %cst_54 = arith.constant 0.000000e+00 : f32
    %457 = vector.broadcast %cst_54 : f32 to vector<16x128xf32>
    %458 = arith.subf %457, %456 : vector<16x128xf32>
    %459 = math.exp %458 : vector<16x128xf32>
    %cst_55 = arith.constant 1.000000e+00 : f32
    %460 = vector.broadcast %cst_55 : f32 to vector<16x128xf32>
    %461 = arith.addf %460, %459 : vector<16x128xf32>
    %cst_56 = arith.constant 1.000000e+00 : f32
    %462 = vector.broadcast %cst_56 : f32 to vector<16x128xf32>
    %463 = arith.divf %462, %461 : vector<16x128xf32>
    %c78 = arith.constant 78 : index
    %464 = memref.load %arg1[%c78] : memref<141xf32, #tpu.memory_space<smem>>
    %465 = vector.broadcast %464 : f32 to vector<16x128xf32>
    %466 = arith.mulf %260, %465 : vector<16x128xf32>
    %c83 = arith.constant 83 : index
    %467 = memref.load %arg1[%c83] : memref<141xf32, #tpu.memory_space<smem>>
    %468 = vector.broadcast %467 : f32 to vector<16x128xf32>
    %469 = arith.mulf %289, %468 : vector<16x128xf32>
    %470 = arith.addf %466, %469 : vector<16x128xf32>
    %c88 = arith.constant 88 : index
    %471 = memref.load %arg1[%c88] : memref<141xf32, #tpu.memory_space<smem>>
    %472 = vector.broadcast %471 : f32 to vector<16x128xf32>
    %473 = arith.mulf %318, %472 : vector<16x128xf32>
    %474 = arith.addf %470, %473 : vector<16x128xf32>
    %c93 = arith.constant 93 : index
    %475 = memref.load %arg1[%c93] : memref<141xf32, #tpu.memory_space<smem>>
    %476 = vector.broadcast %475 : f32 to vector<16x128xf32>
    %477 = arith.mulf %347, %476 : vector<16x128xf32>
    %478 = arith.addf %474, %477 : vector<16x128xf32>
    %c98 = arith.constant 98 : index
    %479 = memref.load %arg1[%c98] : memref<141xf32, #tpu.memory_space<smem>>
    %480 = vector.broadcast %479 : f32 to vector<16x128xf32>
    %481 = arith.mulf %376, %480 : vector<16x128xf32>
    %482 = arith.addf %478, %481 : vector<16x128xf32>
    %c103 = arith.constant 103 : index
    %483 = memref.load %arg1[%c103] : memref<141xf32, #tpu.memory_space<smem>>
    %484 = vector.broadcast %483 : f32 to vector<16x128xf32>
    %485 = arith.addf %482, %484 : vector<16x128xf32>
    %cst_57 = arith.constant 0.000000e+00 : f32
    %486 = vector.broadcast %cst_57 : f32 to vector<16x128xf32>
    %487 = arith.subf %486, %485 : vector<16x128xf32>
    %488 = math.exp %487 : vector<16x128xf32>
    %cst_58 = arith.constant 1.000000e+00 : f32
    %489 = vector.broadcast %cst_58 : f32 to vector<16x128xf32>
    %490 = arith.addf %489, %488 : vector<16x128xf32>
    %cst_59 = arith.constant 1.000000e+00 : f32
    %491 = vector.broadcast %cst_59 : f32 to vector<16x128xf32>
    %492 = arith.divf %491, %490 : vector<16x128xf32>
    %c79 = arith.constant 79 : index
    %493 = memref.load %arg1[%c79] : memref<141xf32, #tpu.memory_space<smem>>
    %494 = vector.broadcast %493 : f32 to vector<16x128xf32>
    %495 = arith.mulf %260, %494 : vector<16x128xf32>
    %c84 = arith.constant 84 : index
    %496 = memref.load %arg1[%c84] : memref<141xf32, #tpu.memory_space<smem>>
    %497 = vector.broadcast %496 : f32 to vector<16x128xf32>
    %498 = arith.mulf %289, %497 : vector<16x128xf32>
    %499 = arith.addf %495, %498 : vector<16x128xf32>
    %c89 = arith.constant 89 : index
    %500 = memref.load %arg1[%c89] : memref<141xf32, #tpu.memory_space<smem>>
    %501 = vector.broadcast %500 : f32 to vector<16x128xf32>
    %502 = arith.mulf %318, %501 : vector<16x128xf32>
    %503 = arith.addf %499, %502 : vector<16x128xf32>
    %c94 = arith.constant 94 : index
    %504 = memref.load %arg1[%c94] : memref<141xf32, #tpu.memory_space<smem>>
    %505 = vector.broadcast %504 : f32 to vector<16x128xf32>
    %506 = arith.mulf %347, %505 : vector<16x128xf32>
    %507 = arith.addf %503, %506 : vector<16x128xf32>
    %c99 = arith.constant 99 : index
    %508 = memref.load %arg1[%c99] : memref<141xf32, #tpu.memory_space<smem>>
    %509 = vector.broadcast %508 : f32 to vector<16x128xf32>
    %510 = arith.mulf %376, %509 : vector<16x128xf32>
    %511 = arith.addf %507, %510 : vector<16x128xf32>
    %c104 = arith.constant 104 : index
    %512 = memref.load %arg1[%c104] : memref<141xf32, #tpu.memory_space<smem>>
    %513 = vector.broadcast %512 : f32 to vector<16x128xf32>
    %514 = arith.addf %511, %513 : vector<16x128xf32>
    %cst_60 = arith.constant 0.000000e+00 : f32
    %515 = vector.broadcast %cst_60 : f32 to vector<16x128xf32>
    %516 = arith.subf %515, %514 : vector<16x128xf32>
    %517 = math.exp %516 : vector<16x128xf32>
    %cst_61 = arith.constant 1.000000e+00 : f32
    %518 = vector.broadcast %cst_61 : f32 to vector<16x128xf32>
    %519 = arith.addf %518, %517 : vector<16x128xf32>
    %cst_62 = arith.constant 1.000000e+00 : f32
    %520 = vector.broadcast %cst_62 : f32 to vector<16x128xf32>
    %521 = arith.divf %520, %519 : vector<16x128xf32>
    %c105 = arith.constant 105 : index
    %522 = memref.load %arg1[%c105] : memref<141xf32, #tpu.memory_space<smem>>
    %523 = vector.broadcast %522 : f32 to vector<16x128xf32>
    %524 = arith.mulf %405, %523 : vector<16x128xf32>
    %c110 = arith.constant 110 : index
    %525 = memref.load %arg1[%c110] : memref<141xf32, #tpu.memory_space<smem>>
    %526 = vector.broadcast %525 : f32 to vector<16x128xf32>
    %527 = arith.mulf %434, %526 : vector<16x128xf32>
    %528 = arith.addf %524, %527 : vector<16x128xf32>
    %c115 = arith.constant 115 : index
    %529 = memref.load %arg1[%c115] : memref<141xf32, #tpu.memory_space<smem>>
    %530 = vector.broadcast %529 : f32 to vector<16x128xf32>
    %531 = arith.mulf %463, %530 : vector<16x128xf32>
    %532 = arith.addf %528, %531 : vector<16x128xf32>
    %c120 = arith.constant 120 : index
    %533 = memref.load %arg1[%c120] : memref<141xf32, #tpu.memory_space<smem>>
    %534 = vector.broadcast %533 : f32 to vector<16x128xf32>
    %535 = arith.mulf %492, %534 : vector<16x128xf32>
    %536 = arith.addf %532, %535 : vector<16x128xf32>
    %c125 = arith.constant 125 : index
    %537 = memref.load %arg1[%c125] : memref<141xf32, #tpu.memory_space<smem>>
    %538 = vector.broadcast %537 : f32 to vector<16x128xf32>
    %539 = arith.mulf %521, %538 : vector<16x128xf32>
    %540 = arith.addf %536, %539 : vector<16x128xf32>
    %c130 = arith.constant 130 : index
    %541 = memref.load %arg1[%c130] : memref<141xf32, #tpu.memory_space<smem>>
    %542 = vector.broadcast %541 : f32 to vector<16x128xf32>
    %543 = arith.addf %540, %542 : vector<16x128xf32>
    %cst_63 = arith.constant 0.000000e+00 : f32
    %544 = vector.broadcast %cst_63 : f32 to vector<16x128xf32>
    %545 = arith.subf %544, %543 : vector<16x128xf32>
    %546 = math.exp %545 : vector<16x128xf32>
    %cst_64 = arith.constant 1.000000e+00 : f32
    %547 = vector.broadcast %cst_64 : f32 to vector<16x128xf32>
    %548 = arith.addf %547, %546 : vector<16x128xf32>
    %cst_65 = arith.constant 1.000000e+00 : f32
    %549 = vector.broadcast %cst_65 : f32 to vector<16x128xf32>
    %550 = arith.divf %549, %548 : vector<16x128xf32>
    %c106 = arith.constant 106 : index
    %551 = memref.load %arg1[%c106] : memref<141xf32, #tpu.memory_space<smem>>
    %552 = vector.broadcast %551 : f32 to vector<16x128xf32>
    %553 = arith.mulf %405, %552 : vector<16x128xf32>
    %c111 = arith.constant 111 : index
    %554 = memref.load %arg1[%c111] : memref<141xf32, #tpu.memory_space<smem>>
    %555 = vector.broadcast %554 : f32 to vector<16x128xf32>
    %556 = arith.mulf %434, %555 : vector<16x128xf32>
    %557 = arith.addf %553, %556 : vector<16x128xf32>
    %c116 = arith.constant 116 : index
    %558 = memref.load %arg1[%c116] : memref<141xf32, #tpu.memory_space<smem>>
    %559 = vector.broadcast %558 : f32 to vector<16x128xf32>
    %560 = arith.mulf %463, %559 : vector<16x128xf32>
    %561 = arith.addf %557, %560 : vector<16x128xf32>
    %c121 = arith.constant 121 : index
    %562 = memref.load %arg1[%c121] : memref<141xf32, #tpu.memory_space<smem>>
    %563 = vector.broadcast %562 : f32 to vector<16x128xf32>
    %564 = arith.mulf %492, %563 : vector<16x128xf32>
    %565 = arith.addf %561, %564 : vector<16x128xf32>
    %c126 = arith.constant 126 : index
    %566 = memref.load %arg1[%c126] : memref<141xf32, #tpu.memory_space<smem>>
    %567 = vector.broadcast %566 : f32 to vector<16x128xf32>
    %568 = arith.mulf %521, %567 : vector<16x128xf32>
    %569 = arith.addf %565, %568 : vector<16x128xf32>
    %c131 = arith.constant 131 : index
    %570 = memref.load %arg1[%c131] : memref<141xf32, #tpu.memory_space<smem>>
    %571 = vector.broadcast %570 : f32 to vector<16x128xf32>
    %572 = arith.addf %569, %571 : vector<16x128xf32>
    %cst_66 = arith.constant 0.000000e+00 : f32
    %573 = vector.broadcast %cst_66 : f32 to vector<16x128xf32>
    %574 = arith.subf %573, %572 : vector<16x128xf32>
    %575 = math.exp %574 : vector<16x128xf32>
    %cst_67 = arith.constant 1.000000e+00 : f32
    %576 = vector.broadcast %cst_67 : f32 to vector<16x128xf32>
    %577 = arith.addf %576, %575 : vector<16x128xf32>
    %cst_68 = arith.constant 1.000000e+00 : f32
    %578 = vector.broadcast %cst_68 : f32 to vector<16x128xf32>
    %579 = arith.divf %578, %577 : vector<16x128xf32>
    %c107 = arith.constant 107 : index
    %580 = memref.load %arg1[%c107] : memref<141xf32, #tpu.memory_space<smem>>
    %581 = vector.broadcast %580 : f32 to vector<16x128xf32>
    %582 = arith.mulf %405, %581 : vector<16x128xf32>
    %c112 = arith.constant 112 : index
    %583 = memref.load %arg1[%c112] : memref<141xf32, #tpu.memory_space<smem>>
    %584 = vector.broadcast %583 : f32 to vector<16x128xf32>
    %585 = arith.mulf %434, %584 : vector<16x128xf32>
    %586 = arith.addf %582, %585 : vector<16x128xf32>
    %c117 = arith.constant 117 : index
    %587 = memref.load %arg1[%c117] : memref<141xf32, #tpu.memory_space<smem>>
    %588 = vector.broadcast %587 : f32 to vector<16x128xf32>
    %589 = arith.mulf %463, %588 : vector<16x128xf32>
    %590 = arith.addf %586, %589 : vector<16x128xf32>
    %c122 = arith.constant 122 : index
    %591 = memref.load %arg1[%c122] : memref<141xf32, #tpu.memory_space<smem>>
    %592 = vector.broadcast %591 : f32 to vector<16x128xf32>
    %593 = arith.mulf %492, %592 : vector<16x128xf32>
    %594 = arith.addf %590, %593 : vector<16x128xf32>
    %c127 = arith.constant 127 : index
    %595 = memref.load %arg1[%c127] : memref<141xf32, #tpu.memory_space<smem>>
    %596 = vector.broadcast %595 : f32 to vector<16x128xf32>
    %597 = arith.mulf %521, %596 : vector<16x128xf32>
    %598 = arith.addf %594, %597 : vector<16x128xf32>
    %c132 = arith.constant 132 : index
    %599 = memref.load %arg1[%c132] : memref<141xf32, #tpu.memory_space<smem>>
    %600 = vector.broadcast %599 : f32 to vector<16x128xf32>
    %601 = arith.addf %598, %600 : vector<16x128xf32>
    %cst_69 = arith.constant 0.000000e+00 : f32
    %602 = vector.broadcast %cst_69 : f32 to vector<16x128xf32>
    %603 = arith.subf %602, %601 : vector<16x128xf32>
    %604 = math.exp %603 : vector<16x128xf32>
    %cst_70 = arith.constant 1.000000e+00 : f32
    %605 = vector.broadcast %cst_70 : f32 to vector<16x128xf32>
    %606 = arith.addf %605, %604 : vector<16x128xf32>
    %cst_71 = arith.constant 1.000000e+00 : f32
    %607 = vector.broadcast %cst_71 : f32 to vector<16x128xf32>
    %608 = arith.divf %607, %606 : vector<16x128xf32>
    %c108 = arith.constant 108 : index
    %609 = memref.load %arg1[%c108] : memref<141xf32, #tpu.memory_space<smem>>
    %610 = vector.broadcast %609 : f32 to vector<16x128xf32>
    %611 = arith.mulf %405, %610 : vector<16x128xf32>
    %c113 = arith.constant 113 : index
    %612 = memref.load %arg1[%c113] : memref<141xf32, #tpu.memory_space<smem>>
    %613 = vector.broadcast %612 : f32 to vector<16x128xf32>
    %614 = arith.mulf %434, %613 : vector<16x128xf32>
    %615 = arith.addf %611, %614 : vector<16x128xf32>
    %c118 = arith.constant 118 : index
    %616 = memref.load %arg1[%c118] : memref<141xf32, #tpu.memory_space<smem>>
    %617 = vector.broadcast %616 : f32 to vector<16x128xf32>
    %618 = arith.mulf %463, %617 : vector<16x128xf32>
    %619 = arith.addf %615, %618 : vector<16x128xf32>
    %c123 = arith.constant 123 : index
    %620 = memref.load %arg1[%c123] : memref<141xf32, #tpu.memory_space<smem>>
    %621 = vector.broadcast %620 : f32 to vector<16x128xf32>
    %622 = arith.mulf %492, %621 : vector<16x128xf32>
    %623 = arith.addf %619, %622 : vector<16x128xf32>
    %c128 = arith.constant 128 : index
    %624 = memref.load %arg1[%c128] : memref<141xf32, #tpu.memory_space<smem>>
    %625 = vector.broadcast %624 : f32 to vector<16x128xf32>
    %626 = arith.mulf %521, %625 : vector<16x128xf32>
    %627 = arith.addf %623, %626 : vector<16x128xf32>
    %c133 = arith.constant 133 : index
    %628 = memref.load %arg1[%c133] : memref<141xf32, #tpu.memory_space<smem>>
    %629 = vector.broadcast %628 : f32 to vector<16x128xf32>
    %630 = arith.addf %627, %629 : vector<16x128xf32>
    %cst_72 = arith.constant 0.000000e+00 : f32
    %631 = vector.broadcast %cst_72 : f32 to vector<16x128xf32>
    %632 = arith.subf %631, %630 : vector<16x128xf32>
    %633 = math.exp %632 : vector<16x128xf32>
    %cst_73 = arith.constant 1.000000e+00 : f32
    %634 = vector.broadcast %cst_73 : f32 to vector<16x128xf32>
    %635 = arith.addf %634, %633 : vector<16x128xf32>
    %cst_74 = arith.constant 1.000000e+00 : f32
    %636 = vector.broadcast %cst_74 : f32 to vector<16x128xf32>
    %637 = arith.divf %636, %635 : vector<16x128xf32>
    %c109 = arith.constant 109 : index
    %638 = memref.load %arg1[%c109] : memref<141xf32, #tpu.memory_space<smem>>
    %639 = vector.broadcast %638 : f32 to vector<16x128xf32>
    %640 = arith.mulf %405, %639 : vector<16x128xf32>
    %c114 = arith.constant 114 : index
    %641 = memref.load %arg1[%c114] : memref<141xf32, #tpu.memory_space<smem>>
    %642 = vector.broadcast %641 : f32 to vector<16x128xf32>
    %643 = arith.mulf %434, %642 : vector<16x128xf32>
    %644 = arith.addf %640, %643 : vector<16x128xf32>
    %c119 = arith.constant 119 : index
    %645 = memref.load %arg1[%c119] : memref<141xf32, #tpu.memory_space<smem>>
    %646 = vector.broadcast %645 : f32 to vector<16x128xf32>
    %647 = arith.mulf %463, %646 : vector<16x128xf32>
    %648 = arith.addf %644, %647 : vector<16x128xf32>
    %c124 = arith.constant 124 : index
    %649 = memref.load %arg1[%c124] : memref<141xf32, #tpu.memory_space<smem>>
    %650 = vector.broadcast %649 : f32 to vector<16x128xf32>
    %651 = arith.mulf %492, %650 : vector<16x128xf32>
    %652 = arith.addf %648, %651 : vector<16x128xf32>
    %c129 = arith.constant 129 : index
    %653 = memref.load %arg1[%c129] : memref<141xf32, #tpu.memory_space<smem>>
    %654 = vector.broadcast %653 : f32 to vector<16x128xf32>
    %655 = arith.mulf %521, %654 : vector<16x128xf32>
    %656 = arith.addf %652, %655 : vector<16x128xf32>
    %c134 = arith.constant 134 : index
    %657 = memref.load %arg1[%c134] : memref<141xf32, #tpu.memory_space<smem>>
    %658 = vector.broadcast %657 : f32 to vector<16x128xf32>
    %659 = arith.addf %656, %658 : vector<16x128xf32>
    %cst_75 = arith.constant 0.000000e+00 : f32
    %660 = vector.broadcast %cst_75 : f32 to vector<16x128xf32>
    %661 = arith.subf %660, %659 : vector<16x128xf32>
    %662 = math.exp %661 : vector<16x128xf32>
    %cst_76 = arith.constant 1.000000e+00 : f32
    %663 = vector.broadcast %cst_76 : f32 to vector<16x128xf32>
    %664 = arith.addf %663, %662 : vector<16x128xf32>
    %cst_77 = arith.constant 1.000000e+00 : f32
    %665 = vector.broadcast %cst_77 : f32 to vector<16x128xf32>
    %666 = arith.divf %665, %664 : vector<16x128xf32>
    %c135 = arith.constant 135 : index
    %667 = memref.load %arg1[%c135] : memref<141xf32, #tpu.memory_space<smem>>
    %668 = vector.broadcast %667 : f32 to vector<16x128xf32>
    %669 = arith.mulf %550, %668 : vector<16x128xf32>
    %c136 = arith.constant 136 : index
    %670 = memref.load %arg1[%c136] : memref<141xf32, #tpu.memory_space<smem>>
    %671 = vector.broadcast %670 : f32 to vector<16x128xf32>
    %672 = arith.mulf %579, %671 : vector<16x128xf32>
    %673 = arith.addf %669, %672 : vector<16x128xf32>
    %c137 = arith.constant 137 : index
    %674 = memref.load %arg1[%c137] : memref<141xf32, #tpu.memory_space<smem>>
    %675 = vector.broadcast %674 : f32 to vector<16x128xf32>
    %676 = arith.mulf %608, %675 : vector<16x128xf32>
    %677 = arith.addf %673, %676 : vector<16x128xf32>
    %c138 = arith.constant 138 : index
    %678 = memref.load %arg1[%c138] : memref<141xf32, #tpu.memory_space<smem>>
    %679 = vector.broadcast %678 : f32 to vector<16x128xf32>
    %680 = arith.mulf %637, %679 : vector<16x128xf32>
    %681 = arith.addf %677, %680 : vector<16x128xf32>
    %c139 = arith.constant 139 : index
    %682 = memref.load %arg1[%c139] : memref<141xf32, #tpu.memory_space<smem>>
    %683 = vector.broadcast %682 : f32 to vector<16x128xf32>
    %684 = arith.mulf %666, %683 : vector<16x128xf32>
    %685 = arith.addf %681, %684 : vector<16x128xf32>
    %c140 = arith.constant 140 : index
    %686 = memref.load %arg1[%c140] : memref<141xf32, #tpu.memory_space<smem>>
    %687 = vector.broadcast %686 : f32 to vector<16x128xf32>
    %688 = arith.addf %685, %687 : vector<16x128xf32>
    %c0_78 = arith.constant 0 : index
    %c0_79 = arith.constant 0 : index
    %689 = vector.load %arg4[%c0_78, %c0_79] : memref<16x128xf32, #tpu.memory_space<vmem>>, vector<16x128xf32>
    tpu.vector_store %arg4[%c0_78, %c0_79], %688 {strides = array<i32>} : memref<16x128xf32, #tpu.memory_space<vmem>>, vector<16x128xf32>,
    return
  }
  func.func @transform_0(%arg0: i32) -> i32 {
    %c0_i32 = arith.constant 0 : i32
    %c0_i32_0 = arith.constant 0 : i32
    return %c0_i32 : i32
  }
  func.func @transform_1(%arg0: i32) -> (i32, i32) {
    %c0_i32 = arith.constant 0 : i32
    %c0_i32_0 = arith.constant 0 : i32
    return %arg0, %c0_i32 : i32, i32
  }
  func.func @transform_2(%arg0: i32) -> (i32, i32) {
    %c0_i32 = arith.constant 0 : i32
    %c0_i32_0 = arith.constant 0 : i32
    return %arg0, %c0_i32 : i32, i32
  }
  func.func @transform_3(%arg0: i32) -> (i32, i32) {
    %c0_i32 = arith.constant 0 : i32
    %c0_i32_0 = arith.constant 0 : i32
    return %arg0, %c0_i32 : i32, i32
  }
}

</mosaic_0001>

<llo_original>
// kernel: pinn_forward.1
$region0: #{pinn_forward.1}
  #allocation0 [shape = 'u32[]', space=smem, size = 0x4, offset = 0x4, fixed_abs, tag = 'smem constant byte address 0x4 - core index']
  #allocation1 [shape = 'u32[72,128]{1,0:T(1,128)}', space=vmem, size = 0x9000, scoped, tag = 'internal scratch']
  %s0 = inlined_call_operand.vmem [shape: f32[141], index: 0, kind: input, shape index: {}]
  %s1 = inlined_call_operand.vmem [shape: f32[16,128], index: 1, kind: input, shape index: {}]
  %s2 = inlined_call_operand.vmem [shape: f32[16,128], index: 2, kind: input, shape index: {}]
  %s3 = inlined_call_operand.hbm [shape: f32[16,128], index: 3, kind: output, shape index: {}]
  %s4 = sld [smem:[#allocation0]]
  $region26: #{pinn_forward.1} parent=0
    _
  %s6 = ssub.s32 1, %s4
  %s7 = scalar_select 0, %s6, %s4
  $region1: #{pinn_forward.1} parent=0
    #allocation2 [shape = 'u8[1024]{0}', space=smem, size = 0x400, scoped, tag = 'input window, operand 0, single buffered']
    #allocation3 [shape = 's32[1]{0}', space=sflag, size = 0x4, scoped, tag = 'scoped memory for pinn_forward.1']
    #allocation4 [shape = 's32[1]{0}', space=sflag, size = 0x4, scoped, tag = 'scoped memory for pinn_forward.1']
    #allocation5 [shape = 'u8[8192]{0}', space=vmem, size = 0x2000, scoped, tag = 'output window, operand 0, single buffered']
    %8 = vsyncpa [#allocation4], 0
    %9 = vsyncpa [#allocation3], 0
    // Predicated region
    $region2: #{pinn_forward.1} parent=1 // pred_check
      _
    $region3: #{pinn_forward.1} parent=1 // pred_check_branch
      %11 = sbr.rel (0) target = $region5
    $region4: #{pinn_forward.1} parent=1 // pred_region
      %13 = vsyncadd [#allocation4], 0
      %s15 = sshll.u32 %s0, 4
      %s16 = int_to_ptr.vmem [resolvable:$true] %s15
      %18 = dma.vmem_to_smem %s16, 32, [#allocation2], [#allocation4]
    $region5: #{pinn_forward.1} parent=1 // pred_fallthru
      _
    // Predicated region
    $region6: #{pinn_forward.1} parent=1 // pred_check
      _
    $region7: #{pinn_forward.1} parent=1 // pred_check_branch
      %20 = sbr.rel (0) target = $region9
    $region8: #{pinn_forward.1} parent=1 // pred_region
      _
    $region9: #{pinn_forward.1} parent=1 // pred_fallthru
      _
    // Predicated region
    $region10: #{pinn_forward.1} parent=1 // pred_check
      _
    $region11: #{pinn_forward.1} parent=1 // pred_check_branch
      %22 = sbr.rel (0) target = $region13
    $region12: #{pinn_forward.1} parent=1 // pred_region
      _
    $region13: #{pinn_forward.1} parent=1 // pred_fallthru
      _
    // Predicated region
    $region14: #{pinn_forward.1} parent=1 // pred_check
      _
    $region15: #{pinn_forward.1} parent=1 // pred_check_branch
      %24 = sbr.rel (0) target = $region17
    $region16: #{pinn_forward.1} parent=1 // pred_region
      %26 = dma.done [#allocation4], 32
    $region17: #{pinn_forward.1} parent=1 // pred_fallthru
      _
    %27 = sfence
    %v28 = vld [vmem:[%s1] sm:$0xff]
    %v29 = vld [vmem:[%s1 + $0x8] sm:$0xff]
    %v30 = vld [vmem:[%s2] sm:$0xff]
    %v31 = vld [vmem:[%s2 + $0x8] sm:$0xff]
    %s32 = sld [smem:[#allocation2]]
    %v33 = vstv %s32
    %v34 = vmul.f32 %v28, %v33
    %v35 = vmul.f32 %v29, %v33
    %s36 = sld [smem:[#allocation2 + $0x5]]
    %v37 = vstv %s36
    %v38 = vmul.f32 %v30, %v37
    %v39 = vmul.f32 %v31, %v37
    %v40 = vadd.f32 %v34, %v38
    %v41 = vadd.f32 %v35, %v39
    %s42 = sld [smem:[#allocation2 + $0xa]]
    %v43 = vstv %s42
    %v44 = vadd.f32 %v40, %v43
    %v45 = vadd.f32 %v41, %v43
    %v46 = vsub.f32 0.0, %v44
    %v47 = vsub.f32 0.0, %v45
    %v48 = vmul.f32 %v46, 1.442695
    %v49 = vpow.pop %v48
    %v50 = vmul.f32 %v47, 1.442695
    %v51 = vpow.pop %v50
    %v52 = vadd.f32 %v49, 1.0
    %v53 = vadd.f32 %v51, 1.0
    %v54 = vrcp.pop %v52
    %v55 = vmul.f32 %v52, %v54
    %v56 = vsub.f32 1.0, %v55
    %v57 = vmul.f32 %v54, %v56
    %v58 = vadd.f32 %v54, %v57
    %vm59 = vweird.f32 %v52
    %vm60 = vweird.f32 %v54
    %vm61 = vmor %vm59, %vm60
    %v62 = vsel %vm61, %v54, %v58
    %v63 = vand.u32 2147483647, %v52
    %vm64 = vcmp.eq.f32.partialorder %v63, 8.507059e+37
    %v65 = vand.u32 %v52, 2147483648
    %v66 = vor.u32 1.1754944e-38, %v65
    %v67 = vsel %vm64, %v66, %v62
    %v68 = vmul.f32 1.0, %v67
    %v69 = vrcp.pop %v53
    %v70 = vmul.f32 %v53, %v69
    %v71 = vsub.f32 1.0, %v70
    %v72 = vmul.f32 %v69, %v71
    %v73 = vadd.f32 %v69, %v72
    %vm74 = vweird.f32 %v53
    %vm75 = vweird.f32 %v69
    %vm76 = vmor %vm74, %vm75
    %v77 = vsel %vm76, %v69, %v73
    %v78 = vand.u32 2147483647, %v53
    %vm79 = vcmp.eq.f32.partialorder %v78, 8.507059e+37
    %v80 = vand.u32 %v53, 2147483648
    %v81 = vor.u32 1.1754944e-38, %v80
    %v82 = vsel %vm79, %v81, %v77
    %v83 = vmul.f32 1.0, %v82
    %s84 = sld [smem:[#allocation2 + $0x1]]
    %v85 = vstv %s84
    %v86 = vmul.f32 %v28, %v85
    %v87 = vmul.f32 %v29, %v85
    %s88 = sld [smem:[#allocation2 + $0x6]]
    %v89 = vstv %s88
    %v90 = vmul.f32 %v30, %v89
    %v91 = vmul.f32 %v31, %v89
    %v92 = vadd.f32 %v86, %v90
    %v93 = vadd.f32 %v87, %v91
    %s94 = sld [smem:[#allocation2 + $0xb]]
    %v95 = vstv %s94
    %v96 = vadd.f32 %v92, %v95
    %v97 = vadd.f32 %v93, %v95
    %v98 = vsub.f32 0.0, %v96
    %v99 = vsub.f32 0.0, %v97
    %v100 = vmul.f32 %v98, 1.442695
    %v101 = vpow.pop %v100
    %v102 = vmul.f32 %v99, 1.442695
    %v103 = vpow.pop %v102
    %v104 = vadd.f32 %v101, 1.0
    %v105 = vadd.f32 %v103, 1.0
    %v106 = vrcp.pop %v104
    %v107 = vmul.f32 %v104, %v106
    %v108 = vsub.f32 1.0, %v107
    %v109 = vmul.f32 %v106, %v108
    %v110 = vadd.f32 %v106, %v109
    %vm111 = vweird.f32 %v104
    %vm112 = vweird.f32 %v106
    %vm113 = vmor %vm111, %vm112
    %v114 = vsel %vm113, %v106, %v110
    %v115 = vand.u32 2147483647, %v104
    %vm116 = vcmp.eq.f32.partialorder %v115, 8.507059e+37
    %v117 = vand.u32 %v104, 2147483648
    %v118 = vor.u32 1.1754944e-38, %v117
    %v119 = vsel %vm116, %v118, %v114
    %v120 = vmul.f32 1.0, %v119
    %v121 = vrcp.pop %v105
    %v122 = vmul.f32 %v105, %v121
    %v123 = vsub.f32 1.0, %v122
    %v124 = vmul.f32 %v121, %v123
    %v125 = vadd.f32 %v121, %v124
    %vm126 = vweird.f32 %v105
    %vm127 = vweird.f32 %v121
    %vm128 = vmor %vm126, %vm127
    %v129 = vsel %vm128, %v121, %v125
    %v130 = vand.u32 2147483647, %v105
    %vm131 = vcmp.eq.f32.partialorder %v130, 8.507059e+37
    %v132 = vand.u32 %v105, 2147483648
    %v133 = vor.u32 1.1754944e-38, %v132
    %v134 = vsel %vm131, %v133, %v129
    %v135 = vmul.f32 1.0, %v134
    %s136 = sld [smem:[#allocation2 + $0x2]]
    %v137 = vstv %s136
    %v138 = vmul.f32 %v28, %v137
    %v139 = vmul.f32 %v29, %v137
    %s140 = sld [smem:[#allocation2 + $0x7]]
    %v141 = vstv %s140
    %v142 = vmul.f32 %v30, %v141
    %v143 = vmul.f32 %v31, %v141
    %v144 = vadd.f32 %v138, %v142
    %v145 = vadd.f32 %v139, %v143
    %s146 = sld [smem:[#allocation2 + $0xc]]
    %v147 = vstv %s146
    %v148 = vadd.f32 %v144, %v147
    %v149 = vadd.f32 %v145, %v147
    %v150 = vsub.f32 0.0, %v148
    %v151 = vsub.f32 0.0, %v149
    %v152 = vmul.f32 %v150, 1.442695
    %v153 = vpow.pop %v152
    %v154 = vmul.f32 %v151, 1.442695
    %v155 = vpow.pop %v154
    %v156 = vadd.f32 %v153, 1.0
    %v157 = vadd.f32 %v155, 1.0
    %v158 = vrcp.pop %v156
    %v159 = vmul.f32 %v156, %v158
    %v160 = vsub.f32 1.0, %v159
    %v161 = vmul.f32 %v158, %v160
    %v162 = vadd.f32 %v158, %v161
    %vm163 = vweird.f32 %v156
    %vm164 = vweird.f32 %v158
    %vm165 = vmor %vm163, %vm164
    %v166 = vsel %vm165, %v158, %v162
    %v167 = vand.u32 2147483647, %v156
    %vm168 = vcmp.eq.f32.partialorder %v167, 8.507059e+37
    %v169 = vand.u32 %v156, 2147483648
    %v170 = vor.u32 1.1754944e-38, %v169
    %v171 = vsel %vm168, %v170, %v166
    %v172 = vmul.f32 1.0, %v171
    %v173 = vrcp.pop %v157
    %v174 = vmul.f32 %v157, %v173
    %v175 = vsub.f32 1.0, %v174
    %v176 = vmul.f32 %v173, %v175
    %v177 = vadd.f32 %v173, %v176
    %vm178 = vweird.f32 %v157
    %vm179 = vweird.f32 %v173
    %vm180 = vmor %vm178, %vm179
    %v181 = vsel %vm180, %v173, %v177
    %v182 = vand.u32 2147483647, %v157
    %vm183 = vcmp.eq.f32.partialorder %v182, 8.507059e+37
    %v184 = vand.u32 %v157, 2147483648
    %v185 = vor.u32 1.1754944e-38, %v184
    %v186 = vsel %vm183, %v185, %v181
    %v187 = vmul.f32 1.0, %v186
    %s188 = sld [smem:[#allocation2 + $0x3]]
    %v189 = vstv %s188
    %v190 = vmul.f32 %v28, %v189
    %v191 = vmul.f32 %v29, %v189
    %s192 = sld [smem:[#allocation2 + $0x8]]
    %v193 = vstv %s192
    %v194 = vmul.f32 %v30, %v193
    %v195 = vmul.f32 %v31, %v193
    %v196 = vadd.f32 %v190, %v194
    %v197 = vadd.f32 %v191, %v195
    %s198 = sld [smem:[#allocation2 + $0xd]]
    %v199 = vstv %s198
    %v200 = vadd.f32 %v196, %v199
    %v201 = vadd.f32 %v197, %v199
    %v202 = vsub.f32 0.0, %v200
    %v203 = vsub.f32 0.0, %v201
    %v204 = vmul.f32 %v202, 1.442695
    %v205 = vpow.pop %v204
    %v206 = vmul.f32 %v203, 1.442695
    %v207 = vpow.pop %v206
    %v208 = vadd.f32 %v205, 1.0
    %v209 = vadd.f32 %v207, 1.0
    %v210 = vrcp.pop %v208
    %v211 = vmul.f32 %v208, %v210
    %v212 = vsub.f32 1.0, %v211
    %v213 = vmul.f32 %v210, %v212
    %v214 = vadd.f32 %v210, %v213
    %vm215 = vweird.f32 %v208
    %vm216 = vweird.f32 %v210
    %vm217 = vmor %vm215, %vm216
    %v218 = vsel %vm217, %v210, %v214
    %v219 = vand.u32 2147483647, %v208
    %vm220 = vcmp.eq.f32.partialorder %v219, 8.507059e+37
    %v221 = vand.u32 %v208, 2147483648
    %v222 = vor.u32 1.1754944e-38, %v221
    %v223 = vsel %vm220, %v222, %v218
    %v224 = vmul.f32 1.0, %v223
    %v225 = vrcp.pop %v209
    %v226 = vmul.f32 %v209, %v225
    %v227 = vsub.f32 1.0, %v226
    %v228 = vmul.f32 %v225, %v227
    %v229 = vadd.f32 %v225, %v228
    %vm230 = vweird.f32 %v209
    %vm231 = vweird.f32 %v225
    %vm232 = vmor %vm230, %vm231
    %v233 = vsel %vm232, %v225, %v229
    %v234 = vand.u32 2147483647, %v209
    %vm235 = vcmp.eq.f32.partialorder %v234, 8.507059e+37
    %v236 = vand.u32 %v209, 2147483648
    %v237 = vor.u32 1.1754944e-38, %v236
    %v238 = vsel %vm235, %v237, %v233
    %v239 = vmul.f32 1.0, %v238
    %s240 = sld [smem:[#allocation2 + $0x4]]
    %v241 = vstv %s240
    %v242 = vmul.f32 %v28, %v241
    %v243 = vmul.f32 %v29, %v241
    %s244 = sld [smem:[#allocation2 + $0x9]]
    %v245 = vstv %s244
    %v246 = vmul.f32 %v30, %v245
    %v247 = vmul.f32 %v31, %v245
    %v248 = vadd.f32 %v242, %v246
    %v249 = vadd.f32 %v243, %v247
    %s250 = sld [smem:[#allocation2 + $0xe]]
    %v251 = vstv %s250
    %v252 = vadd.f32 %v248, %v251
    %v253 = vadd.f32 %v249, %v251
    %v254 = vsub.f32 0.0, %v252
    %v255 = vsub.f32 0.0, %v253
    %v256 = vmul.f32 %v254, 1.442695
    %v257 = vpow.pop %v256
    %v258 = vmul.f32 %v255, 1.442695
    %v259 = vpow.pop %v258
    %v260 = vadd.f32 %v257, 1.0
    %v261 = vadd.f32 %v259, 1.0
    %v262 = vrcp.pop %v260
    %v263 = vmul.f32 %v260, %v262
    %v264 = vsub.f32 1.0, %v263
    %v265 = vmul.f32 %v262, %v264
    %v266 = vadd.f32 %v262, %v265
    %vm267 = vweird.f32 %v260
    %vm268 = vweird.f32 %v262
    %vm269 = vmor %vm267, %vm268
    %v270 = vsel %vm269, %v262, %v266
    %v271 = vand.u32 2147483647, %v260
    %vm272 = vcmp.eq.f32.partialorder %v271, 8.507059e+37
    %v273 = vand.u32 %v260, 2147483648
    %v274 = vor.u32 1.1754944e-38, %v273
    %v275 = vsel %vm272, %v274, %v270
    %v276 = vmul.f32 1.0, %v275
    %v277 = vrcp.pop %v261
    %v278 = vmul.f32 %v261, %v277
    %v279 = vsub.f32 1.0, %v278
    %v280 = vmul.f32 %v277, %v279
    %v281 = vadd.f32 %v277, %v280
    %vm282 = vweird.f32 %v261
    %vm283 = vweird.f32 %v277
    %vm284 = vmor %vm282, %vm283
    %v285 = vsel %vm284, %v277, %v281
    %v286 = vand.u32 2147483647, %v261
    %vm287 = vcmp.eq.f32.partialorder %v286, 8.507059e+37
    %v288 = vand.u32 %v261, 2147483648
    %v289 = vor.u32 1.1754944e-38, %v288
    %v290 = vsel %vm287, %v289, %v285
    %v291 = vmul.f32 1.0, %v290
    %s292 = sld [smem:[#allocation2 + $0xf]]
    %v293 = vstv %s292
    %v294 = vmul.f32 %v68, %v293
    %v295 = vmul.f32 %v83, %v293
    %s296 = sld [smem:[#allocation2 + $0x14]]
    %v297 = vstv %s296
    %v298 = vmul.f32 %v120, %v297
    %v299 = vmul.f32 %v135, %v297
    %v300 = vadd.f32 %v294, %v298
    %v301 = vadd.f32 %v295, %v299
    %s302 = sld [smem:[#allocation2 + $0x19]]
    %v303 = vstv %s302
    %v304 = vmul.f32 %v172, %v303
    %v305 = vmul.f32 %v187, %v303
    %v306 = vadd.f32 %v300, %v304
    %v307 = vadd.f32 %v301, %v305
    %s308 = sld [smem:[#allocation2 + $0x1e]]
    %v309 = vstv %s308
    %v310 = vmul.f32 %v224, %v309
    %v311 = vmul.f32 %v239, %v309
    %v312 = vadd.f32 %v306, %v310
    %v313 = vadd.f32 %v307, %v311
    %s314 = sld [smem:[#allocation2 + $0x23]]
    %v315 = vstv %s314
    %v316 = vmul.f32 %v276, %v315
    %v317 = vmul.f32 %v291, %v315
    %v318 = vadd.f32 %v312, %v316
    %v319 = vadd.f32 %v313, %v317
    %s320 = sld [smem:[#allocation2 + $0x28]]
    %v321 = vstv %s320
    %v322 = vadd.f32 %v318, %v321
    %v323 = vadd.f32 %v319, %v321
    %v324 = vsub.f32 0.0, %v322
    %v325 = vsub.f32 0.0, %v323
    %v326 = vmul.f32 %v324, 1.442695
    %v327 = vpow.pop %v326
    %v328 = vmul.f32 %v325, 1.442695
    %v329 = vpow.pop %v328
    %v330 = vadd.f32 %v327, 1.0
    %v331 = vadd.f32 %v329, 1.0
    %v332 = vrcp.pop %v330
    %v333 = vmul.f32 %v330, %v332
    %v334 = vsub.f32 1.0, %v333
    %v335 = vmul.f32 %v332, %v334
    %v336 = vadd.f32 %v332, %v335
    %vm337 = vweird.f32 %v330
    %vm338 = vweird.f32 %v332
    %vm339 = vmor %vm337, %vm338
    %v340 = vsel %vm339, %v332, %v336
    %v341 = vand.u32 2147483647, %v330
    %vm342 = vcmp.eq.f32.partialorder %v341, 8.507059e+37
    %v343 = vand.u32 %v330, 2147483648
    %v344 = vor.u32 1.1754944e-38, %v343
    %v345 = vsel %vm342, %v344, %v340
    %v346 = vmul.f32 1.0, %v345
    %v347 = vrcp.pop %v331
    %v348 = vmul.f32 %v331, %v347
    %v349 = vsub.f32 1.0, %v348
    %v350 = vmul.f32 %v347, %v349
    %v351 = vadd.f32 %v347, %v350
    %vm352 = vweird.f32 %v331
    %vm353 = vweird.f32 %v347
    %vm354 = vmor %vm352, %vm353
    %v355 = vsel %vm354, %v347, %v351
    %v356 = vand.u32 2147483647, %v331
    %vm357 = vcmp.eq.f32.partialorder %v356, 8.507059e+37
    %v358 = vand.u32 %v331, 2147483648
    %v359 = vor.u32 1.1754944e-38, %v358
    %v360 = vsel %vm357, %v359, %v355
    %v361 = vmul.f32 1.0, %v360
    %s362 = sld [smem:[#allocation2 + $0x10]]
    %v363 = vstv %s362
    %v364 = vmul.f32 %v68, %v363
    %v365 = vmul.f32 %v83, %v363
    %s366 = sld [smem:[#allocation2 + $0x15]]
    %v367 = vstv %s366
    %v368 = vmul.f32 %v120, %v367
    %v369 = vmul.f32 %v135, %v367
    %v370 = vadd.f32 %v364, %v368
    %v371 = vadd.f32 %v365, %v369
    %s372 = sld [smem:[#allocation2 + $0x1a]]
    %v373 = vstv %s372
    %v374 = vmul.f32 %v172, %v373
    %v375 = vmul.f32 %v187, %v373
    %v376 = vadd.f32 %v370, %v374
    %v377 = vadd.f32 %v371, %v375
    %s378 = sld [smem:[#allocation2 + $0x1f]]
    %v379 = vstv %s378
    %v380 = vmul.f32 %v224, %v379
    %v381 = vmul.f32 %v239, %v379
    %v382 = vadd.f32 %v376, %v380
    %v383 = vadd.f32 %v377, %v381
    %s384 = sld [smem:[#allocation2 + $0x24]]
    %v385 = vstv %s384
    %v386 = vmul.f32 %v276, %v385
    %v387 = vmul.f32 %v291, %v385
    %v388 = vadd.f32 %v382, %v386
    %v389 = vadd.f32 %v383, %v387
    %s390 = sld [smem:[#allocation2 + $0x29]]
    %v391 = vstv %s390
    %v392 = vadd.f32 %v388, %v391
    %v393 = vadd.f32 %v389, %v391
    %v394 = vsub.f32 0.0, %v392
    %v395 = vsub.f32 0.0, %v393
    %v396 = vmul.f32 %v394, 1.442695
    %v397 = vpow.pop %v396
    %v398 = vmul.f32 %v395, 1.442695
    %v399 = vpow.pop %v398
    %v400 = vadd.f32 %v397, 1.0
    %v401 = vadd.f32 %v399, 1.0
    %v402 = vrcp.pop %v400
    %v403 = vmul.f32 %v400, %v402
    %v404 = vsub.f32 1.0, %v403
    %v405 = vmul.f32 %v402, %v404
    %v406 = vadd.f32 %v402, %v405
    %vm407 = vweird.f32 %v400
    %vm408 = vweird.f32 %v402
    %vm409 = vmor %vm407, %vm408
    %v410 = vsel %vm409, %v402, %v406
    %v411 = vand.u32 2147483647, %v400
    %vm412 = vcmp.eq.f32.partialorder %v411, 8.507059e+37
    %v413 = vand.u32 %v400, 2147483648
    %v414 = vor.u32 1.1754944e-38, %v413
    %v415 = vsel %vm412, %v414, %v410
    %v416 = vmul.f32 1.0, %v415
    %v417 = vrcp.pop %v401
    %v418 = vmul.f32 %v401, %v417
    %v419 = vsub.f32 1.0, %v418
    %v420 = vmul.f32 %v417, %v419
    %v421 = vadd.f32 %v417, %v420
    %vm422 = vweird.f32 %v401
    %vm423 = vweird.f32 %v417
    %vm424 = vmor %vm422, %vm423
    %v425 = vsel %vm424, %v417, %v421
    %v426 = vand.u32 2147483647, %v401
    %vm427 = vcmp.eq.f32.partialorder %v426, 8.507059e+37
    %v428 = vand.u32 %v401, 2147483648
    %v429 = vor.u32 1.1754944e-38, %v428
    %v430 = vsel %vm427, %v429, %v425
    %v431 = vmul.f32 1.0, %v430
    %s432 = sld [smem:[#allocation2 + $0x11]]
    %v433 = vstv %s432
    %v434 = vmul.f32 %v68, %v433
    %v435 = vmul.f32 %v83, %v433
    %s436 = sld [smem:[#allocation2 + $0x16]]
    %v437 = vstv %s436
    %v438 = vmul.f32 %v120, %v437
    %v439 = vmul.f32 %v135, %v437
    %v440 = vadd.f32 %v434, %v438
    %v441 = vadd.f32 %v435, %v439
    %s442 = sld [smem:[#allocation2 + $0x1b]]
    %v443 = vstv %s442
    %v444 = vmul.f32 %v172, %v443
    %v445 = vmul.f32 %v187, %v443
    %v446 = vadd.f32 %v440, %v444
    %v447 = vadd.f32 %v441, %v445
    %s448 = sld [smem:[#allocation2 + $0x20]]
    %v449 = vstv %s448
    %v450 = vmul.f32 %v224, %v449
    %v451 = vmul.f32 %v239, %v449
    %v452 = vadd.f32 %v446, %v450
    %v453 = vadd.f32 %v447, %v451
    %s454 = sld [smem:[#allocation2 + $0x25]]
    %v455 = vstv %s454
    %v456 = vmul.f32 %v276, %v455
    %v457 = vmul.f32 %v291, %v455
    %v458 = vadd.f32 %v452, %v456
    %v459 = vadd.f32 %v453, %v457
    %s460 = sld [smem:[#allocation2 + $0x2a]]
    %v461 = vstv %s460
    %v462 = vadd.f32 %v458, %v461
    %v463 = vadd.f32 %v459, %v461
    %v464 = vsub.f32 0.0, %v462
    %v465 = vsub.f32 0.0, %v463
    %v466 = vmul.f32 %v464, 1.442695
    %v467 = vpow.pop %v466
    %v468 = vmul.f32 %v465, 1.442695
    %v469 = vpow.pop %v468
    %v470 = vadd.f32 %v467, 1.0
    %v471 = vadd.f32 %v469, 1.0
    %v472 = vrcp.pop %v470
    %v473 = vmul.f32 %v470, %v472
    %v474 = vsub.f32 1.0, %v473
    %v475 = vmul.f32 %v472, %v474
    %v476 = vadd.f32 %v472, %v475
    %vm477 = vweird.f32 %v470
    %vm478 = vweird.f32 %v472
    %vm479 = vmor %vm477, %vm478
    %v480 = vsel %vm479, %v472, %v476
    %v481 = vand.u32 2147483647, %v470
    %vm482 = vcmp.eq.f32.partialorder %v481, 8.507059e+37
    %v483 = vand.u32 %v470, 2147483648
    %v484 = vor.u32 1.1754944e-38, %v483
    %v485 = vsel %vm482, %v484, %v480
    %v486 = vmul.f32 1.0, %v485
    %v487 = vrcp.pop %v471
    %v488 = vmul.f32 %v471, %v487
    %v489 = vsub.f32 1.0, %v488
    %v490 = vmul.f32 %v487, %v489
    %v491 = vadd.f32 %v487, %v490
    %vm492 = vweird.f32 %v471
    %vm493 = vweird.f32 %v487
    %vm494 = vmor %vm492, %vm493
    %v495 = vsel %vm494, %v487, %v491
    %v496 = vand.u32 2147483647, %v471
    %vm497 = vcmp.eq.f32.partialorder %v496, 8.507059e+37
    %v498 = vand.u32 %v471, 2147483648
    %v499 = vor.u32 1.1754944e-38, %v498
    %v500 = vsel %vm497, %v499, %v495
    %v501 = vmul.f32 1.0, %v500
    %s502 = sld [smem:[#allocation2 + $0x12]]
    %v503 = vstv %s502
    %v504 = vmul.f32 %v68, %v503
    %v505 = vmul.f32 %v83, %v503
    %s506 = sld [smem:[#allocation2 + $0x17]]
    %v507 = vstv %s506
    %v508 = vmul.f32 %v120, %v507
    %v509 = vmul.f32 %v135, %v507
    %v510 = vadd.f32 %v504, %v508
    %v511 = vadd.f32 %v505, %v509
    %s512 = sld [smem:[#allocation2 + $0x1c]]
    %v513 = vstv %s512
    %v514 = vmul.f32 %v172, %v513
    %v515 = vmul.f32 %v187, %v513
    %v516 = vadd.f32 %v510, %v514
    %v517 = vadd.f32 %v511, %v515
    %s518 = sld [smem:[#allocation2 + $0x21]]
    %v519 = vstv %s518
    %v520 = vmul.f32 %v224, %v519
    %v521 = vmul.f32 %v239, %v519
    %v522 = vadd.f32 %v516, %v520
    %v523 = vadd.f32 %v517, %v521
    %s524 = sld [smem:[#allocation2 + $0x26]]
    %v525 = vstv %s524
    %v526 = vmul.f32 %v276, %v525
    %v527 = vmul.f32 %v291, %v525
    %v528 = vadd.f32 %v522, %v526
    %v529 = vadd.f32 %v523, %v527
    %s530 = sld [smem:[#allocation2 + $0x2b]]
    %v531 = vstv %s530
    %v532 = vadd.f32 %v528, %v531
    %v533 = vadd.f32 %v529, %v531
    %v534 = vsub.f32 0.0, %v532
    %v535 = vsub.f32 0.0, %v533
    %v536 = vmul.f32 %v534, 1.442695
    %v537 = vpow.pop %v536
    %v538 = vmul.f32 %v535, 1.442695
    %v539 = vpow.pop %v538
    %v540 = vadd.f32 %v537, 1.0
    %v541 = vadd.f32 %v539, 1.0
    %v542 = vrcp.pop %v540
    %v543 = vmul.f32 %v540, %v542
    %v544 = vsub.f32 1.0, %v543
    %v545 = vmul.f32 %v542, %v544
    %v546 = vadd.f32 %v542, %v545
    %vm547 = vweird.f32 %v540
    %vm548 = vweird.f32 %v542
    %vm549 = vmor %vm547, %vm548
    %v550 = vsel %vm549, %v542, %v546
    %v551 = vand.u32 2147483647, %v540
    %vm552 = vcmp.eq.f32.partialorder %v551, 8.507059e+37
    %v553 = vand.u32 %v540, 2147483648
    %v554 = vor.u32 1.1754944e-38, %v553
    %v555 = vsel %vm552, %v554, %v550
    %v556 = vmul.f32 1.0, %v555
    %v557 = vrcp.pop %v541
    %v558 = vmul.f32 %v541, %v557
    %v559 = vsub.f32 1.0, %v558
    %v560 = vmul.f32 %v557, %v559
    %v561 = vadd.f32 %v557, %v560
    %vm562 = vweird.f32 %v541
    %vm563 = vweird.f32 %v557
    %vm564 = vmor %vm562, %vm563
    %v565 = vsel %vm564, %v557, %v561
    %v566 = vand.u32 2147483647, %v541
    %vm567 = vcmp.eq.f32.partialorder %v566, 8.507059e+37
    %v568 = vand.u32 %v541, 2147483648
    %v569 = vor.u32 1.1754944e-38, %v568
    %v570 = vsel %vm567, %v569, %v565
    %v571 = vmul.f32 1.0, %v570
    %s572 = sld [smem:[#allocation2 + $0x13]]
    %v573 = vstv %s572
    %v574 = vmul.f32 %v68, %v573
    %v575 = vmul.f32 %v83, %v573
    %s576 = sld [smem:[#allocation2 + $0x18]]
    %v577 = vstv %s576
    %v578 = vmul.f32 %v120, %v577
    %v579 = vmul.f32 %v135, %v577
    %v580 = vadd.f32 %v574, %v578
    %v581 = vadd.f32 %v575, %v579
    %s582 = sld [smem:[#allocation2 + $0x1d]]
    %v583 = vstv %s582
    %v584 = vmul.f32 %v172, %v583
    %v585 = vmul.f32 %v187, %v583
    %v586 = vadd.f32 %v580, %v584
    %v587 = vadd.f32 %v581, %v585
    %s588 = sld [smem:[#allocation2 + $0x22]]
    %v589 = vstv %s588
    %v590 = vmul.f32 %v224, %v589
    %v591 = vmul.f32 %v239, %v589
    %v592 = vadd.f32 %v586, %v590
    %v593 = vadd.f32 %v587, %v591
    %s594 = sld [smem:[#allocation2 + $0x27]]
    %v595 = vstv %s594
    %v596 = vmul.f32 %v276, %v595
    %v597 = vmul.f32 %v291, %v595
    %v598 = vadd.f32 %v592, %v596
    %v599 = vadd.f32 %v593, %v597
    %s600 = sld [smem:[#allocation2 + $0x2c]]
    %v601 = vstv %s600
    %v602 = vadd.f32 %v598, %v601
    %v603 = vadd.f32 %v599, %v601
    %v604 = vsub.f32 0.0, %v602
    %v605 = vsub.f32 0.0, %v603
    %v606 = vmul.f32 %v604, 1.442695
    %v607 = vpow.pop %v606
    %v608 = vmul.f32 %v605, 1.442695
    %v609 = vpow.pop %v608
    %v610 = vadd.f32 %v607, 1.0
    %v611 = vadd.f32 %v609, 1.0
    %v612 = vrcp.pop %v610
    %v613 = vmul.f32 %v610, %v612
    %v614 = vsub.f32 1.0, %v613
    %v615 = vmul.f32 %v612, %v614
    %v616 = vadd.f32 %v612, %v615
    %vm617 = vweird.f32 %v610
    %vm618 = vweird.f32 %v612
    %vm619 = vmor %vm617, %vm618
    %v620 = vsel %vm619, %v612, %v616
    %v621 = vand.u32 2147483647, %v610
    %vm622 = vcmp.eq.f32.partialorder %v621, 8.507059e+37
    %v623 = vand.u32 %v610, 2147483648
    %v624 = vor.u32 1.1754944e-38, %v623
    %v625 = vsel %vm622, %v624, %v620
    %v626 = vmul.f32 1.0, %v625
    %v627 = vrcp.pop %v611
    %v628 = vmul.f32 %v611, %v627
    %v629 = vsub.f32 1.0, %v628
    %v630 = vmul.f32 %v627, %v629
    %v631 = vadd.f32 %v627, %v630
    %vm632 = vweird.f32 %v611
    %vm633 = vweird.f32 %v627
    %vm634 = vmor %vm632, %vm633
    %v635 = vsel %vm634, %v627, %v631
    %v636 = vand.u32 2147483647, %v611
    %vm637 = vcmp.eq.f32.partialorder %v636, 8.507059e+37
    %v638 = vand.u32 %v611, 2147483648
    %v639 = vor.u32 1.1754944e-38, %v638
    %v640 = vsel %vm637, %v639, %v635
    %v641 = vmul.f32 1.0, %v640
    %s642 = sld [smem:[#allocation2 + $0x2d]]
    %v643 = vstv %s642
    %v644 = vmul.f32 %v346, %v643
    %v645 = vmul.f32 %v361, %v643
    %s646 = sld [smem:[#allocation2 + $0x32]]
    %v647 = vstv %s646
    %v648 = vmul.f32 %v416, %v647
    %v649 = vmul.f32 %v431, %v647
    %v650 = vadd.f32 %v644, %v648
    %v651 = vadd.f32 %v645, %v649
    %s652 = sld [smem:[#allocation2 + $0x37]]
    %v653 = vstv %s652
    %v654 = vmul.f32 %v486, %v653
    %v655 = vmul.f32 %v501, %v653
    %v656 = vadd.f32 %v650, %v654
    %v657 = vadd.f32 %v651, %v655
    %s658 = sld [smem:[#allocation2 + $0x3c]]
    %v659 = vstv %s658
    %v660 = vmul.f32 %v556, %v659
    %v661 = vmul.f32 %v571, %v659
    %v662 = vadd.f32 %v656, %v660
    %v663 = vadd.f32 %v657, %v661
    %s664 = sld [smem:[#allocation2 + $0x41]]
    %v665 = vstv %s664
    %v666 = vmul.f32 %v626, %v665
    %v667 = vmul.f32 %v641, %v665
    %v668 = vadd.f32 %v662, %v666
    %v669 = vadd.f32 %v663, %v667
    %s670 = sld [smem:[#allocation2 + $0x46]]
    %v671 = vstv %s670
    %v672 = vadd.f32 %v668, %v671
    %v673 = vadd.f32 %v669, %v671
    %v674 = vsub.f32 0.0, %v672
    %v675 = vsub.f32 0.0, %v673
    %v676 = vmul.f32 %v674, 1.442695
    %v677 = vpow.pop %v676
    %v678 = vmul.f32 %v675, 1.442695
    %v679 = vpow.pop %v678
    %v680 = vadd.f32 %v677, 1.0
    %v681 = vadd.f32 %v679, 1.0
    %v682 = vrcp.pop %v680
    %v683 = vmul.f32 %v680, %v682
    %v684 = vsub.f32 1.0, %v683
    %v685 = vmul.f32 %v682, %v684
    %v686 = vadd.f32 %v682, %v685
    %vm687 = vweird.f32 %v680
    %vm688 = vweird.f32 %v682
    %vm689 = vmor %vm687, %vm688
    %v690 = vsel %vm689, %v682, %v686
    %v691 = vand.u32 2147483647, %v680
    %vm692 = vcmp.eq.f32.partialorder %v691, 8.507059e+37
    %v693 = vand.u32 %v680, 2147483648
    %v694 = vor.u32 1.1754944e-38, %v693
    %v695 = vsel %vm692, %v694, %v690
    %v696 = vmul.f32 1.0, %v695
    %v697 = vrcp.pop %v681
    %v698 = vmul.f32 %v681, %v697
    %v699 = vsub.f32 1.0, %v698
    %v700 = vmul.f32 %v697, %v699
    %v701 = vadd.f32 %v697, %v700
    %vm702 = vweird.f32 %v681
    %vm703 = vweird.f32 %v697
    %vm704 = vmor %vm702, %vm703
    %v705 = vsel %vm704, %v697, %v701
    %v706 = vand.u32 2147483647, %v681
    %vm707 = vcmp.eq.f32.partialorder %v706, 8.507059e+37
    %v708 = vand.u32 %v681, 2147483648
    %v709 = vor.u32 1.1754944e-38, %v708
    %v710 = vsel %vm707, %v709, %v705
    %v711 = vmul.f32 1.0, %v710
    %s712 = sld [smem:[#allocation2 + $0x2e]]
    %v713 = vstv %s712
    %v714 = vmul.f32 %v346, %v713
    %v715 = vmul.f32 %v361, %v713
    %s716 = sld [smem:[#allocation2 + $0x33]]
    %v717 = vstv %s716
    %v718 = vmul.f32 %v416, %v717
    %v719 = vmul.f32 %v431, %v717
    %v720 = vadd.f32 %v714, %v718
    %v721 = vadd.f32 %v715, %v719
    %s722 = sld [smem:[#allocation2 + $0x38]]
    %v723 = vstv %s722
    %v724 = vmul.f32 %v486, %v723
    %v725 = vmul.f32 %v501, %v723
    %v726 = vadd.f32 %v720, %v724
    %v727 = vadd.f32 %v721, %v725
    %s728 = sld [smem:[#allocation2 + $0x3d]]
    %v729 = vstv %s728
    %v730 = vmul.f32 %v556, %v729
    %v731 = vmul.f32 %v571, %v729
    %v732 = vadd.f32 %v726, %v730
    %v733 = vadd.f32 %v727, %v731
    %s734 = sld [smem:[#allocation2 + $0x42]]
    %v735 = vstv %s734
    %v736 = vmul.f32 %v626, %v735
    %v737 = vmul.f32 %v641, %v735
    %v738 = vadd.f32 %v732, %v736
    %v739 = vadd.f32 %v733, %v737
    %s740 = sld [smem:[#allocation2 + $0x47]]
    %v741 = vstv %s740
    %v742 = vadd.f32 %v738, %v741
    %v743 = vadd.f32 %v739, %v741
    %v744 = vsub.f32 0.0, %v742
    %v745 = vsub.f32 0.0, %v743
    %v746 = vmul.f32 %v744, 1.442695
    %v747 = vpow.pop %v746
    %v748 = vmul.f32 %v745, 1.442695
    %v749 = vpow.pop %v748
    %v750 = vadd.f32 %v747, 1.0
    %v751 = vadd.f32 %v749, 1.0
    %v752 = vrcp.pop %v750
    %v753 = vmul.f32 %v750, %v752
    %v754 = vsub.f32 1.0, %v753
    %v755 = vmul.f32 %v752, %v754
    %v756 = vadd.f32 %v752, %v755
    %vm757 = vweird.f32 %v750
    %vm758 = vweird.f32 %v752
    %vm759 = vmor %vm757, %vm758
    %v760 = vsel %vm759, %v752, %v756
    %v761 = vand.u32 2147483647, %v750
    %vm762 = vcmp.eq.f32.partialorder %v761, 8.507059e+37
    %v763 = vand.u32 %v750, 2147483648
    %v764 = vor.u32 1.1754944e-38, %v763
    %v765 = vsel %vm762, %v764, %v760
    %v766 = vmul.f32 1.0, %v765
    %v767 = vrcp.pop %v751
    %v768 = vmul.f32 %v751, %v767
    %v769 = vsub.f32 1.0, %v768
    %v770 = vmul.f32 %v767, %v769
    %v771 = vadd.f32 %v767, %v770
    %vm772 = vweird.f32 %v751
    %vm773 = vweird.f32 %v767
    %vm774 = vmor %vm772, %vm773
    %v775 = vsel %vm774, %v767, %v771
    %v776 = vand.u32 2147483647, %v751
    %vm777 = vcmp.eq.f32.partialorder %v776, 8.507059e+37
    %v778 = vand.u32 %v751, 2147483648
    %v779 = vor.u32 1.1754944e-38, %v778
    %v780 = vsel %vm777, %v779, %v775
    %v781 = vmul.f32 1.0, %v780
    %s782 = sld [smem:[#allocation2 + $0x2f]]
    %v783 = vstv %s782
    %v784 = vmul.f32 %v346, %v783
    %v785 = vmul.f32 %v361, %v783
    %s786 = sld [smem:[#allocation2 + $0x34]]
    %v787 = vstv %s786
    %v788 = vmul.f32 %v416, %v787
    %v789 = vmul.f32 %v431, %v787
    %v790 = vadd.f32 %v784, %v788
    %v791 = vadd.f32 %v785, %v789
    %s792 = sld [smem:[#allocation2 + $0x39]]
    %v793 = vstv %s792
    %v794 = vmul.f32 %v486, %v793
    %v795 = vmul.f32 %v501, %v793
    %v796 = vadd.f32 %v790, %v794
    %v797 = vadd.f32 %v791, %v795
    %s798 = sld [smem:[#allocation2 + $0x3e]]
    %v799 = vstv %s798
    %v800 = vmul.f32 %v556, %v799
    %v801 = vmul.f32 %v571, %v799
    %v802 = vadd.f32 %v796, %v800
    %v803 = vadd.f32 %v797, %v801
    %s804 = sld [smem:[#allocation2 + $0x43]]
    %v805 = vstv %s804
    %v806 = vmul.f32 %v626, %v805
    %v807 = vmul.f32 %v641, %v805
    %v808 = vadd.f32 %v802, %v806
    %v809 = vadd.f32 %v803, %v807
    %s810 = sld [smem:[#allocation2 + $0x48]]
    %v811 = vstv %s810
    %v812 = vadd.f32 %v808, %v811
    %v813 = vadd.f32 %v809, %v811
    %v814 = vsub.f32 0.0, %v812
    %v815 = vsub.f32 0.0, %v813
    %v816 = vmul.f32 %v814, 1.442695
    %v817 = vpow.pop %v816
    %v818 = vmul.f32 %v815, 1.442695
    %v819 = vpow.pop %v818
    %v820 = vadd.f32 %v817, 1.0
    %v821 = vadd.f32 %v819, 1.0
    %v822 = vrcp.pop %v820
    %v823 = vmul.f32 %v820, %v822
    %v824 = vsub.f32 1.0, %v823
    %v825 = vmul.f32 %v822, %v824
    %v826 = vadd.f32 %v822, %v825
    %vm827 = vweird.f32 %v820
    %vm828 = vweird.f32 %v822
    %vm829 = vmor %vm827, %vm828
    %v830 = vsel %vm829, %v822, %v826
    %v831 = vand.u32 2147483647, %v820
    %vm832 = vcmp.eq.f32.partialorder %v831, 8.507059e+37
    %v833 = vand.u32 %v820, 2147483648
    %v834 = vor.u32 1.1754944e-38, %v833
    %v835 = vsel %vm832, %v834, %v830
    %v836 = vmul.f32 1.0, %v835
    %v837 = vrcp.pop %v821
    %v838 = vmul.f32 %v821, %v837
    %v839 = vsub.f32 1.0, %v838
    %v840 = vmul.f32 %v837, %v839
    %v841 = vadd.f32 %v837, %v840
    %vm842 = vweird.f32 %v821
    %vm843 = vweird.f32 %v837
    %vm844 = vmor %vm842, %vm843
    %v845 = vsel %vm844, %v837, %v841
    %v846 = vand.u32 2147483647, %v821
    %vm847 = vcmp.eq.f32.partialorder %v846, 8.507059e+37
    %v848 = vand.u32 %v821, 2147483648
    %v849 = vor.u32 1.1754944e-38, %v848
    %v850 = vsel %vm847, %v849, %v845
    %v851 = vmul.f32 1.0, %v850
    %s852 = sld [smem:[#allocation2 + $0x30]]
    %v853 = vstv %s852
    %v854 = vmul.f32 %v346, %v853
    %v855 = vmul.f32 %v361, %v853
    %s856 = sld [smem:[#allocation2 + $0x35]]
    %v857 = vstv %s856
    %v858 = vmul.f32 %v416, %v857
    %v859 = vmul.f32 %v431, %v857
    %v860 = vadd.f32 %v854, %v858
    %v861 = vadd.f32 %v855, %v859
    %s862 = sld [smem:[#allocation2 + $0x3a]]
    %v863 = vstv %s862
    %v864 = vmul.f32 %v486, %v863
    %v865 = vmul.f32 %v501, %v863
    %v866 = vadd.f32 %v860, %v864
    %v867 = vadd.f32 %v861, %v865
    %s868 = sld [smem:[#allocation2 + $0x3f]]
    %v869 = vstv %s868
    %v870 = vmul.f32 %v556, %v869
    %v871 = vmul.f32 %v571, %v869
    %v872 = vadd.f32 %v866, %v870
    %v873 = vadd.f32 %v867, %v871
    %s874 = sld [smem:[#allocation2 + $0x44]]
    %v875 = vstv %s874
    %v876 = vmul.f32 %v626, %v875
    %v877 = vmul.f32 %v641, %v875
    %v878 = vadd.f32 %v872, %v876
    %v879 = vadd.f32 %v873, %v877
    %s880 = sld [smem:[#allocation2 + $0x49]]
    %v881 = vstv %s880
    %v882 = vadd.f32 %v878, %v881
    %v883 = vadd.f32 %v879, %v881
    %v884 = vsub.f32 0.0, %v882
    %v885 = vsub.f32 0.0, %v883
    %v886 = vmul.f32 %v884, 1.442695
    %v887 = vpow.pop %v886
    %v888 = vmul.f32 %v885, 1.442695
    %v889 = vpow.pop %v888
    %v890 = vadd.f32 %v887, 1.0
    %v891 = vadd.f32 %v889, 1.0
    %v892 = vrcp.pop %v890
    %v893 = vmul.f32 %v890, %v892
    %v894 = vsub.f32 1.0, %v893
    %v895 = vmul.f32 %v892, %v894
    %v896 = vadd.f32 %v892, %v895
    %vm897 = vweird.f32 %v890
    %vm898 = vweird.f32 %v892
    %vm899 = vmor %vm897, %vm898
    %v900 = vsel %vm899, %v892, %v896
    %v901 = vand.u32 2147483647, %v890
    %vm902 = vcmp.eq.f32.partialorder %v901, 8.507059e+37
    %v903 = vand.u32 %v890, 2147483648
    %v904 = vor.u32 1.1754944e-38, %v903
    %v905 = vsel %vm902, %v904, %v900
    %v906 = vmul.f32 1.0, %v905
    %v907 = vrcp.pop %v891
    %v908 = vmul.f32 %v891, %v907
    %v909 = vsub.f32 1.0, %v908
    %v910 = vmul.f32 %v907, %v909
    %v911 = vadd.f32 %v907, %v910
    %vm912 = vweird.f32 %v891
    %vm913 = vweird.f32 %v907
    %vm914 = vmor %vm912, %vm913
    %v915 = vsel %vm914, %v907, %v911
    %v916 = vand.u32 2147483647, %v891
    %vm917 = vcmp.eq.f32.partialorder %v916, 8.507059e+37
    %v918 = vand.u32 %v891, 2147483648
    %v919 = vor.u32 1.1754944e-38, %v918
    %v920 = vsel %vm917, %v919, %v915
    %v921 = vmul.f32 1.0, %v920
    %s922 = sld [smem:[#allocation2 + $0x31]]
    %v923 = vstv %s922
    %v924 = vmul.f32 %v346, %v923
    %v925 = vmul.f32 %v361, %v923
    %s926 = sld [smem:[#allocation2 + $0x36]]
    %v927 = vstv %s926
    %v928 = vmul.f32 %v416, %v927
    %v929 = vmul.f32 %v431, %v927
    %v930 = vadd.f32 %v924, %v928
    %v931 = vadd.f32 %v925, %v929
    %s932 = sld [smem:[#allocation2 + $0x3b]]
    %v933 = vstv %s932
    %v934 = vmul.f32 %v486, %v933
    %v935 = vmul.f32 %v501, %v933
    %v936 = vadd.f32 %v930, %v934
    %v937 = vadd.f32 %v931, %v935
    %s938 = sld [smem:[#allocation2 + $0x40]]
    %v939 = vstv %s938
    %v940 = vmul.f32 %v556, %v939
    %v941 = vmul.f32 %v571, %v939
    %v942 = vadd.f32 %v936, %v940
    %v943 = vadd.f32 %v937, %v941
    %s944 = sld [smem:[#allocation2 + $0x45]]
    %v945 = vstv %s944
    %v946 = vmul.f32 %v626, %v945
    %v947 = vmul.f32 %v641, %v945
    %v948 = vadd.f32 %v942, %v946
    %v949 = vadd.f32 %v943, %v947
    %s950 = sld [smem:[#allocation2 + $0x4a]]
    %v951 = vstv %s950
    %v952 = vadd.f32 %v948, %v951
    %v953 = vadd.f32 %v949, %v951
    %v954 = vsub.f32 0.0, %v952
    %v955 = vsub.f32 0.0, %v953
    %v956 = vmul.f32 %v954, 1.442695
    %v957 = vpow.pop %v956
    %v958 = vmul.f32 %v955, 1.442695
    %v959 = vpow.pop %v958
    %v960 = vadd.f32 %v957, 1.0
    %v961 = vadd.f32 %v959, 1.0
    %v962 = vrcp.pop %v960
    %v963 = vmul.f32 %v960, %v962
    %v964 = vsub.f32 1.0, %v963
    %v965 = vmul.f32 %v962, %v964
    %v966 = vadd.f32 %v962, %v965
    %vm967 = vweird.f32 %v960
    %vm968 = vweird.f32 %v962
    %vm969 = vmor %vm967, %vm968
    %v970 = vsel %vm969, %v962, %v966
    %v971 = vand.u32 2147483647, %v960
    %vm972 = vcmp.eq.f32.partialorder %v971, 8.507059e+37
    %v973 = vand.u32 %v960, 2147483648
    %v974 = vor.u32 1.1754944e-38, %v973
    %v975 = vsel %vm972, %v974, %v970
    %v976 = vmul.f32 1.0, %v975
    %v977 = vrcp.pop %v961
    %v978 = vmul.f32 %v961, %v977
    %v979 = vsub.f32 1.0, %v978
    %v980 = vmul.f32 %v977, %v979
    %v981 = vadd.f32 %v977, %v980
    %vm982 = vweird.f32 %v961
    %vm983 = vweird.f32 %v977
    %vm984 = vmor %vm982, %vm983
    %v985 = vsel %vm984, %v977, %v981
    %v986 = vand.u32 2147483647, %v961
    %vm987 = vcmp.eq.f32.partialorder %v986, 8.507059e+37
    %v988 = vand.u32 %v961, 2147483648
    %v989 = vor.u32 1.1754944e-38, %v988
    %v990 = vsel %vm987, %v989, %v985
    %v991 = vmul.f32 1.0, %v990
    %s992 = sld [smem:[#allocation2 + $0x4b]]
    %v993 = vstv %s992
    %v994 = vmul.f32 %v696, %v993
    %v995 = vmul.f32 %v711, %v993
    %s996 = sld [smem:[#allocation2 + $0x50]]
    %v997 = vstv %s996
    %v998 = vmul.f32 %v766, %v997
    %v999 = vmul.f32 %v781, %v997
    %v1000 = vadd.f32 %v994, %v998
    %v1001 = vadd.f32 %v995, %v999
    %s1002 = sld [smem:[#allocation2 + $0x55]]
    %v1003 = vstv %s1002
    %v1004 = vmul.f32 %v836, %v1003
    %v1005 = vmul.f32 %v851, %v1003
    %v1006 = vadd.f32 %v1000, %v1004
    %v1007 = vadd.f32 %v1001, %v1005
    %s1008 = sld [smem:[#allocation2 + $0x5a]]
    %v1009 = vstv %s1008
    %v1010 = vmul.f32 %v906, %v1009
    %v1011 = vmul.f32 %v921, %v1009
    %v1012 = vadd.f32 %v1006, %v1010
    %v1013 = vadd.f32 %v1007, %v1011
    %s1014 = sld [smem:[#allocation2 + $0x5f]]
    %v1015 = vstv %s1014
    %v1016 = vmul.f32 %v976, %v1015
    %v1017 = vmul.f32 %v991, %v1015
    %v1018 = vadd.f32 %v1012, %v1016
    %v1019 = vadd.f32 %v1013, %v1017
    %s1020 = sld [smem:[#allocation2 + $0x64]]
    %v1021 = vstv %s1020
    %v1022 = vadd.f32 %v1018, %v1021
    %v1023 = vadd.f32 %v1019, %v1021
    %v1024 = vsub.f32 0.0, %v1022
    %v1025 = vsub.f32 0.0, %v1023
    %v1026 = vmul.f32 %v1024, 1.442695
    %v1027 = vpow.pop %v1026
    %v1028 = vmul.f32 %v1025, 1.442695
    %v1029 = vpow.pop %v1028
    %v1030 = vadd.f32 %v1027, 1.0
    %v1031 = vadd.f32 %v1029, 1.0
    %v1032 = vrcp.pop %v1030
    %v1033 = vmul.f32 %v1030, %v1032
    %v1034 = vsub.f32 1.0, %v1033
    %v1035 = vmul.f32 %v1032, %v1034
    %v1036 = vadd.f32 %v1032, %v1035
    %vm1037 = vweird.f32 %v1030
    %vm1038 = vweird.f32 %v1032
    %vm1039 = vmor %vm1037, %vm1038
    %v1040 = vsel %vm1039, %v1032, %v1036
    %v1041 = vand.u32 2147483647, %v1030
    %vm1042 = vcmp.eq.f32.partialorder %v1041, 8.507059e+37
    %v1043 = vand.u32 %v1030, 2147483648
    %v1044 = vor.u32 1.1754944e-38, %v1043
    %v1045 = vsel %vm1042, %v1044, %v1040
    %v1046 = vmul.f32 1.0, %v1045
    %v1047 = vrcp.pop %v1031
    %v1048 = vmul.f32 %v1031, %v1047
    %v1049 = vsub.f32 1.0, %v1048
    %v1050 = vmul.f32 %v1047, %v1049
    %v1051 = vadd.f32 %v1047, %v1050
    %vm1052 = vweird.f32 %v1031
    %vm1053 = vweird.f32 %v1047
    %vm1054 = vmor %vm1052, %vm1053
    %v1055 = vsel %vm1054, %v1047, %v1051
    %v1056 = vand.u32 2147483647, %v1031
    %vm1057 = vcmp.eq.f32.partialorder %v1056, 8.507059e+37
    %v1058 = vand.u32 %v1031, 2147483648
    %v1059 = vor.u32 1.1754944e-38, %v1058
    %v1060 = vsel %vm1057, %v1059, %v1055
    %v1061 = vmul.f32 1.0, %v1060
    %s1062 = sld [smem:[#allocation2 + $0x4c]]
    %v1063 = vstv %s1062
    %v1064 = vmul.f32 %v696, %v1063
    %v1065 = vmul.f32 %v711, %v1063
    %s1066 = sld [smem:[#allocation2 + $0x51]]
    %v1067 = vstv %s1066
    %v1068 = vmul.f32 %v766, %v1067
    %v1069 = vmul.f32 %v781, %v1067
    %v1070 = vadd.f32 %v1064, %v1068
    %v1071 = vadd.f32 %v1065, %v1069
    %s1072 = sld [smem:[#allocation2 + $0x56]]
    %v1073 = vstv %s1072
    %v1074 = vmul.f32 %v836, %v1073
    %v1075 = vmul.f32 %v851, %v1073
    %v1076 = vadd.f32 %v1070, %v1074
    %v1077 = vadd.f32 %v1071, %v1075
    %s1078 = sld [smem:[#allocation2 + $0x5b]]
    %v1079 = vstv %s1078
    %v1080 = vmul.f32 %v906, %v1079
    %v1081 = vmul.f32 %v921, %v1079
    %v1082 = vadd.f32 %v1076, %v1080
    %v1083 = vadd.f32 %v1077, %v1081
    %s1084 = sld [smem:[#allocation2 + $0x60]]
    %v1085 = vstv %s1084
    %v1086 = vmul.f32 %v976, %v1085
    %v1087 = vmul.f32 %v991, %v1085
    %v1088 = vadd.f32 %v1082, %v1086
    %v1089 = vadd.f32 %v1083, %v1087
    %s1090 = sld [smem:[#allocation2 + $0x65]]
    %v1091 = vstv %s1090
    %v1092 = vadd.f32 %v1088, %v1091
    %v1093 = vadd.f32 %v1089, %v1091
    %v1094 = vsub.f32 0.0, %v1092
    %v1095 = vsub.f32 0.0, %v1093
    %v1096 = vmul.f32 %v1094, 1.442695
    %v1097 = vpow.pop %v1096
    %v1098 = vmul.f32 %v1095, 1.442695
    %v1099 = vpow.pop %v1098
    %v1100 = vadd.f32 %v1097, 1.0
    %v1101 = vadd.f32 %v1099, 1.0
    %v1102 = vrcp.pop %v1100
    %v1103 = vmul.f32 %v1100, %v1102
    %v1104 = vsub.f32 1.0, %v1103
    %v1105 = vmul.f32 %v1102, %v1104
    %v1106 = vadd.f32 %v1102, %v1105
    %vm1107 = vweird.f32 %v1100
    %vm1108 = vweird.f32 %v1102
    %vm1109 = vmor %vm1107, %vm1108
    %v1110 = vsel %vm1109, %v1102, %v1106
    %v1111 = vand.u32 2147483647, %v1100
    %vm1112 = vcmp.eq.f32.partialorder %v1111, 8.507059e+37
    %v1113 = vand.u32 %v1100, 2147483648
    %v1114 = vor.u32 1.1754944e-38, %v1113
    %v1115 = vsel %vm1112, %v1114, %v1110
    %v1116 = vmul.f32 1.0, %v1115
    %v1117 = vrcp.pop %v1101
    %v1118 = vmul.f32 %v1101, %v1117
    %v1119 = vsub.f32 1.0, %v1118
    %v1120 = vmul.f32 %v1117, %v1119
    %v1121 = vadd.f32 %v1117, %v1120
    %vm1122 = vweird.f32 %v1101
    %vm1123 = vweird.f32 %v1117
    %vm1124 = vmor %vm1122, %vm1123
    %v1125 = vsel %vm1124, %v1117, %v1121
    %v1126 = vand.u32 2147483647, %v1101
    %vm1127 = vcmp.eq.f32.partialorder %v1126, 8.507059e+37
    %v1128 = vand.u32 %v1101, 2147483648
    %v1129 = vor.u32 1.1754944e-38, %v1128
    %v1130 = vsel %vm1127, %v1129, %v1125
    %v1131 = vmul.f32 1.0, %v1130
    %s1132 = sld [smem:[#allocation2 + $0x4d]]
    %v1133 = vstv %s1132
    %v1134 = vmul.f32 %v696, %v1133
    %v1135 = vmul.f32 %v711, %v1133
    %s1136 = sld [smem:[#allocation2 + $0x52]]
    %v1137 = vstv %s1136
    %v1138 = vmul.f32 %v766, %v1137
    %v1139 = vmul.f32 %v781, %v1137
    %v1140 = vadd.f32 %v1134, %v1138
    %v1141 = vadd.f32 %v1135, %v1139
    %s1142 = sld [smem:[#allocation2 + $0x57]]
    %v1143 = vstv %s1142
    %v1144 = vmul.f32 %v836, %v1143
    %v1145 = vmul.f32 %v851, %v1143
    %v1146 = vadd.f32 %v1140, %v1144
    %v1147 = vadd.f32 %v1141, %v1145
    %s1148 = sld [smem:[#allocation2 + $0x5c]]
    %v1149 = vstv %s1148
    %v1150 = vmul.f32 %v906, %v1149
    %v1151 = vmul.f32 %v921, %v1149
    %v1152 = vadd.f32 %v1146, %v1150
    %v1153 = vadd.f32 %v1147, %v1151
    %s1154 = sld [smem:[#allocation2 + $0x61]]
    %v1155 = vstv %s1154
    %v1156 = vmul.f32 %v976, %v1155
    %v1157 = vmul.f32 %v991, %v1155
    %v1158 = vadd.f32 %v1152, %v1156
    %v1159 = vadd.f32 %v1153, %v1157
    %s1160 = sld [smem:[#allocation2 + $0x66]]
    %v1161 = vstv %s1160
    %v1162 = vadd.f32 %v1158, %v1161
    %v1163 = vadd.f32 %v1159, %v1161
    %v1164 = vsub.f32 0.0, %v1162
    %v1165 = vsub.f32 0.0, %v1163
    %v1166 = vmul.f32 %v1164, 1.442695
    %v1167 = vpow.pop %v1166
    %v1168 = vmul.f32 %v1165, 1.442695
    %v1169 = vpow.pop %v1168
    %v1170 = vadd.f32 %v1167, 1.0
    %v1171 = vadd.f32 %v1169, 1.0
    %v1172 = vrcp.pop %v1170
    %v1173 = vmul.f32 %v1170, %v1172
    %v1174 = vsub.f32 1.0, %v1173
    %v1175 = vmul.f32 %v1172, %v1174
    %v1176 = vadd.f32 %v1172, %v1175
    %vm1177 = vweird.f32 %v1170
    %vm1178 = vweird.f32 %v1172
    %vm1179 = vmor %vm1177, %vm1178
    %v1180 = vsel %vm1179, %v1172, %v1176
    %v1181 = vand.u32 2147483647, %v1170
    %vm1182 = vcmp.eq.f32.partialorder %v1181, 8.507059e+37
    %v1183 = vand.u32 %v1170, 2147483648
    %v1184 = vor.u32 1.1754944e-38, %v1183
    %v1185 = vsel %vm1182, %v1184, %v1180
    %v1186 = vmul.f32 1.0, %v1185
    %v1187 = vrcp.pop %v1171
    %v1188 = vmul.f32 %v1171, %v1187
    %v1189 = vsub.f32 1.0, %v1188
    %v1190 = vmul.f32 %v1187, %v1189
    %v1191 = vadd.f32 %v1187, %v1190
    %vm1192 = vweird.f32 %v1171
    %vm1193 = vweird.f32 %v1187
    %vm1194 = vmor %vm1192, %vm1193
    %v1195 = vsel %vm1194, %v1187, %v1191
    %v1196 = vand.u32 2147483647, %v1171
    %vm1197 = vcmp.eq.f32.partialorder %v1196, 8.507059e+37
    %v1198 = vand.u32 %v1171, 2147483648
    %v1199 = vor.u32 1.1754944e-38, %v1198
    %v1200 = vsel %vm1197, %v1199, %v1195
    %v1201 = vmul.f32 1.0, %v1200
    %s1202 = sld [smem:[#allocation2 + $0x4e]]
    %v1203 = vstv %s1202
    %v1204 = vmul.f32 %v696, %v1203
    %v1205 = vmul.f32 %v711, %v1203
    %s1206 = sld [smem:[#allocation2 + $0x53]]
    %v1207 = vstv %s1206
    %v1208 = vmul.f32 %v766, %v1207
    %v1209 = vmul.f32 %v781, %v1207
    %v1210 = vadd.f32 %v1204, %v1208
    %v1211 = vadd.f32 %v1205, %v1209
    %s1212 = sld [smem:[#allocation2 + $0x58]]
    %v1213 = vstv %s1212
    %v1214 = vmul.f32 %v836, %v1213
    %v1215 = vmul.f32 %v851, %v1213
    %v1216 = vadd.f32 %v1210, %v1214
    %v1217 = vadd.f32 %v1211, %v1215
    %s1218 = sld [smem:[#allocation2 + $0x5d]]
    %v1219 = vstv %s1218
    %v1220 = vmul.f32 %v906, %v1219
    %v1221 = vmul.f32 %v921, %v1219
    %v1222 = vadd.f32 %v1216, %v1220
    %v1223 = vadd.f32 %v1217, %v1221
    %s1224 = sld [smem:[#allocation2 + $0x62]]
    %v1225 = vstv %s1224
    %v1226 = vmul.f32 %v976, %v1225
    %v1227 = vmul.f32 %v991, %v1225
    %v1228 = vadd.f32 %v1222, %v1226
    %v1229 = vadd.f32 %v1223, %v1227
    %s1230 = sld [smem:[#allocation2 + $0x67]]
    %v1231 = vstv %s1230
    %v1232 = vadd.f32 %v1228, %v1231
    %v1233 = vadd.f32 %v1229, %v1231
    %v1234 = vsub.f32 0.0, %v1232
    %v1235 = vsub.f32 0.0, %v1233
    %v1236 = vmul.f32 %v1234, 1.442695
    %v1237 = vpow.pop %v1236
    %v1238 = vmul.f32 %v1235, 1.442695
    %v1239 = vpow.pop %v1238
    %v1240 = vadd.f32 %v1237, 1.0
    %v1241 = vadd.f32 %v1239, 1.0
    %v1242 = vrcp.pop %v1240
    %v1243 = vmul.f32 %v1240, %v1242
    %v1244 = vsub.f32 1.0, %v1243
    %v1245 = vmul.f32 %v1242, %v1244
    %v1246 = vadd.f32 %v1242, %v1245
    %vm1247 = vweird.f32 %v1240
    %vm1248 = vweird.f32 %v1242
    %vm1249 = vmor %vm1247, %vm1248
    %v1250 = vsel %vm1249, %v1242, %v1246
    %v1251 = vand.u32 2147483647, %v1240
    %vm1252 = vcmp.eq.f32.partialorder %v1251, 8.507059e+37
    %v1253 = vand.u32 %v1240, 2147483648
    %v1254 = vor.u32 1.1754944e-38, %v1253
    %v1255 = vsel %vm1252, %v1254, %v1250
    %v1256 = vmul.f32 1.0, %v1255
    %v1257 = vrcp.pop %v1241
    %v1258 = vmul.f32 %v1241, %v1257
    %v1259 = vsub.f32 1.0, %v1258
    %v1260 = vmul.f32 %v1257, %v1259
    %v1261 = vadd.f32 %v1257, %v1260
    %vm1262 = vweird.f32 %v1241
    %vm1263 = vweird.f32 %v1257
    %vm1264 = vmor %vm1262, %vm1263
    %v1265 = vsel %vm1264, %v1257, %v1261
    %v1266 = vand.u32 2147483647, %v1241
    %vm1267 = vcmp.eq.f32.partialorder %v1266, 8.507059e+37
    %v1268 = vand.u32 %v1241, 2147483648
    %v1269 = vor.u32 1.1754944e-38, %v1268
    %v1270 = vsel %vm1267, %v1269, %v1265
    %v1271 = vmul.f32 1.0, %v1270
    %s1272 = sld [smem:[#allocation2 + $0x4f]]
    %v1273 = vstv %s1272
    %v1274 = vmul.f32 %v696, %v1273
    %v1275 = vmul.f32 %v711, %v1273
    %s1276 = sld [smem:[#allocation2 + $0x54]]
    %v1277 = vstv %s1276
    %v1278 = vmul.f32 %v766, %v1277
    %v1279 = vmul.f32 %v781, %v1277
    %v1280 = vadd.f32 %v1274, %v1278
    %v1281 = vadd.f32 %v1275, %v1279
    %s1282 = sld [smem:[#allocation2 + $0x59]]
    %v1283 = vstv %s1282
    %v1284 = vmul.f32 %v836, %v1283
    %v1285 = vmul.f32 %v851, %v1283
    %v1286 = vadd.f32 %v1280, %v1284
    %v1287 = vadd.f32 %v1281, %v1285
    %s1288 = sld [smem:[#allocation2 + $0x5e]]
    %v1289 = vstv %s1288
    %v1290 = vmul.f32 %v906, %v1289
    %v1291 = vmul.f32 %v921, %v1289
    %v1292 = vadd.f32 %v1286, %v1290
    %v1293 = vadd.f32 %v1287, %v1291
    %s1294 = sld [smem:[#allocation2 + $0x63]]
    %v1295 = vstv %s1294
    %v1296 = vmul.f32 %v976, %v1295
    %v1297 = vmul.f32 %v991, %v1295
    %v1298 = vadd.f32 %v1292, %v1296
    %v1299 = vadd.f32 %v1293, %v1297
    %s1300 = sld [smem:[#allocation2 + $0x68]]
    %v1301 = vstv %s1300
    %v1302 = vadd.f32 %v1298, %v1301
    %v1303 = vadd.f32 %v1299, %v1301
    %v1304 = vsub.f32 0.0, %v1302
    %v1305 = vsub.f32 0.0, %v1303
    %v1306 = vmul.f32 %v1304, 1.442695
    %v1307 = vpow.pop %v1306
    %v1308 = vmul.f32 %v1305, 1.442695
    %v1309 = vpow.pop %v1308
    %v1310 = vadd.f32 %v1307, 1.0
    %v1311 = vadd.f32 %v1309, 1.0
    %v1312 = vrcp.pop %v1310
    %v1313 = vmul.f32 %v1310, %v1312
    %v1314 = vsub.f32 1.0, %v1313
    %v1315 = vmul.f32 %v1312, %v1314
    %v1316 = vadd.f32 %v1312, %v1315
    %vm1317 = vweird.f32 %v1310
    %vm1318 = vweird.f32 %v1312
    %vm1319 = vmor %vm1317, %vm1318
    %v1320 = vsel %vm1319, %v1312, %v1316
    %v1321 = vand.u32 2147483647, %v1310
    %vm1322 = vcmp.eq.f32.partialorder %v1321, 8.507059e+37
    %v1323 = vand.u32 %v1310, 2147483648
    %v1324 = vor.u32 1.1754944e-38, %v1323
    %v1325 = vsel %vm1322, %v1324, %v1320
    %v1326 = vmul.f32 1.0, %v1325
    %v1327 = vrcp.pop %v1311
    %v1328 = vmul.f32 %v1311, %v1327
    %v1329 = vsub.f32 1.0, %v1328
    %v1330 = vmul.f32 %v1327, %v1329
    %v1331 = vadd.f32 %v1327, %v1330
    %vm1332 = vweird.f32 %v1311
    %vm1333 = vweird.f32 %v1327
    %vm1334 = vmor %vm1332, %vm1333
    %v1335 = vsel %vm1334, %v1327, %v1331
    %v1336 = vand.u32 2147483647, %v1311
    %vm1337 = vcmp.eq.f32.partialorder %v1336, 8.507059e+37
    %v1338 = vand.u32 %v1311, 2147483648
    %v1339 = vor.u32 1.1754944e-38, %v1338
    %v1340 = vsel %vm1337, %v1339, %v1335
    %v1341 = vmul.f32 1.0, %v1340
    %s1342 = sld [smem:[#allocation2 + $0x69]]
    %v1343 = vstv %s1342
    %v1344 = vmul.f32 %v1046, %v1343
    %v1345 = vmul.f32 %v1061, %v1343
    %s1346 = sld [smem:[#allocation2 + $0x6e]]
    %v1347 = vstv %s1346
    %v1348 = vmul.f32 %v1116, %v1347
    %v1349 = vmul.f32 %v1131, %v1347
    %v1350 = vadd.f32 %v1344, %v1348
    %v1351 = vadd.f32 %v1345, %v1349
    %s1352 = sld [smem:[#allocation2 + $0x73]]
    %v1353 = vstv %s1352
    %v1354 = vmul.f32 %v1186, %v1353
    %v1355 = vmul.f32 %v1201, %v1353
    %v1356 = vadd.f32 %v1350, %v1354
    %v1357 = vadd.f32 %v1351, %v1355
    %s1358 = sld [smem:[#allocation2 + $0x78]]
    %v1359 = vstv %s1358
    %v1360 = vmul.f32 %v1256, %v1359
    %v1361 = vmul.f32 %v1271, %v1359
    %v1362 = vadd.f32 %v1356, %v1360
    %v1363 = vadd.f32 %v1357, %v1361
    %s1364 = sld [smem:[#allocation2 + $0x7d]]
    %v1365 = vstv %s1364
    %v1366 = vmul.f32 %v1326, %v1365
    %v1367 = vmul.f32 %v1341, %v1365
    %v1368 = vadd.f32 %v1362, %v1366
    %v1369 = vadd.f32 %v1363, %v1367
    %s1370 = sld [smem:[#allocation2 + $0x82]]
    %v1371 = vstv %s1370
    %v1372 = vadd.f32 %v1368, %v1371
    %v1373 = vadd.f32 %v1369, %v1371
    %v1374 = vsub.f32 0.0, %v1372
    %v1375 = vsub.f32 0.0, %v1373
    %v1376 = vmul.f32 %v1374, 1.442695
    %v1377 = vpow.pop %v1376
    %v1378 = vmul.f32 %v1375, 1.442695
    %v1379 = vpow.pop %v1378
    %v1380 = vadd.f32 %v1377, 1.0
    %v1381 = vadd.f32 %v1379, 1.0
    %v1382 = vrcp.pop %v1380
    %v1383 = vmul.f32 %v1380, %v1382
    %v1384 = vsub.f32 1.0, %v1383
    %v1385 = vmul.f32 %v1382, %v1384
    %v1386 = vadd.f32 %v1382, %v1385
    %vm1387 = vweird.f32 %v1380
    %vm1388 = vweird.f32 %v1382
    %vm1389 = vmor %vm1387, %vm1388
    %v1390 = vsel %vm1389, %v1382, %v1386
    %v1391 = vand.u32 2147483647, %v1380
    %vm1392 = vcmp.eq.f32.partialorder %v1391, 8.507059e+37
    %v1393 = vand.u32 %v1380, 2147483648
    %v1394 = vor.u32 1.1754944e-38, %v1393
    %v1395 = vsel %vm1392, %v1394, %v1390
    %v1396 = vmul.f32 1.0, %v1395
    %v1397 = vrcp.pop %v1381
    %v1398 = vmul.f32 %v1381, %v1397
    %v1399 = vsub.f32 1.0, %v1398
    %v1400 = vmul.f32 %v1397, %v1399
    %v1401 = vadd.f32 %v1397, %v1400
    %vm1402 = vweird.f32 %v1381
    %vm1403 = vweird.f32 %v1397
    %vm1404 = vmor %vm1402, %vm1403
    %v1405 = vsel %vm1404, %v1397, %v1401
    %v1406 = vand.u32 2147483647, %v1381
    %vm1407 = vcmp.eq.f32.partialorder %v1406, 8.507059e+37
    %v1408 = vand.u32 %v1381, 2147483648
    %v1409 = vor.u32 1.1754944e-38, %v1408
    %v1410 = vsel %vm1407, %v1409, %v1405
    %v1411 = vmul.f32 1.0, %v1410
    %s1412 = sld [smem:[#allocation2 + $0x6a]]
    %v1413 = vstv %s1412
    %v1414 = vmul.f32 %v1046, %v1413
    %v1415 = vmul.f32 %v1061, %v1413
    %s1416 = sld [smem:[#allocation2 + $0x6f]]
    %v1417 = vstv %s1416
    %v1418 = vmul.f32 %v1116, %v1417
    %v1419 = vmul.f32 %v1131, %v1417
    %v1420 = vadd.f32 %v1414, %v1418
    %v1421 = vadd.f32 %v1415, %v1419
    %s1422 = sld [smem:[#allocation2 + $0x74]]
    %v1423 = vstv %s1422
    %v1424 = vmul.f32 %v1186, %v1423
    %v1425 = vmul.f32 %v1201, %v1423
    %v1426 = vadd.f32 %v1420, %v1424
    %v1427 = vadd.f32 %v1421, %v1425
    %s1428 = sld [smem:[#allocation2 + $0x79]]
    %v1429 = vstv %s1428
    %v1430 = vmul.f32 %v1256, %v1429
    %v1431 = vmul.f32 %v1271, %v1429
    %v1432 = vadd.f32 %v1426, %v1430
    %v1433 = vadd.f32 %v1427, %v1431
    %s1434 = sld [smem:[#allocation2 + $0x7e]]
    %v1435 = vstv %s1434
    %v1436 = vmul.f32 %v1326, %v1435
    %v1437 = vmul.f32 %v1341, %v1435
    %v1438 = vadd.f32 %v1432, %v1436
    %v1439 = vadd.f32 %v1433, %v1437
    %s1440 = sld [smem:[#allocation2 + $0x83]]
    %v1441 = vstv %s1440
    %v1442 = vadd.f32 %v1438, %v1441
    %v1443 = vadd.f32 %v1439, %v1441
    %v1444 = vsub.f32 0.0, %v1442
    %v1445 = vsub.f32 0.0, %v1443
    %v1446 = vmul.f32 %v1444, 1.442695
    %v1447 = vpow.pop %v1446
    %v1448 = vmul.f32 %v1445, 1.442695
    %v1449 = vpow.pop %v1448
    %v1450 = vadd.f32 %v1447, 1.0
    %v1451 = vadd.f32 %v1449, 1.0
    %v1452 = vrcp.pop %v1450
    %v1453 = vmul.f32 %v1450, %v1452
    %v1454 = vsub.f32 1.0, %v1453
    %v1455 = vmul.f32 %v1452, %v1454
    %v1456 = vadd.f32 %v1452, %v1455
    %vm1457 = vweird.f32 %v1450
    %vm1458 = vweird.f32 %v1452
    %vm1459 = vmor %vm1457, %vm1458
    %v1460 = vsel %vm1459, %v1452, %v1456
    %v1461 = vand.u32 2147483647, %v1450
    %vm1462 = vcmp.eq.f32.partialorder %v1461, 8.507059e+37
    %v1463 = vand.u32 %v1450, 2147483648
    %v1464 = vor.u32 1.1754944e-38, %v1463
    %v1465 = vsel %vm1462, %v1464, %v1460
    %v1466 = vmul.f32 1.0, %v1465
    %v1467 = vrcp.pop %v1451
    %v1468 = vmul.f32 %v1451, %v1467
    %v1469 = vsub.f32 1.0, %v1468
    %v1470 = vmul.f32 %v1467, %v1469
    %v1471 = vadd.f32 %v1467, %v1470
    %vm1472 = vweird.f32 %v1451
    %vm1473 = vweird.f32 %v1467
    %vm1474 = vmor %vm1472, %vm1473
    %v1475 = vsel %vm1474, %v1467, %v1471
    %v1476 = vand.u32 2147483647, %v1451
    %vm1477 = vcmp.eq.f32.partialorder %v1476, 8.507059e+37
    %v1478 = vand.u32 %v1451, 2147483648
    %v1479 = vor.u32 1.1754944e-38, %v1478
    %v1480 = vsel %vm1477, %v1479, %v1475
    %v1481 = vmul.f32 1.0, %v1480
    %s1482 = sld [smem:[#allocation2 + $0x6b]]
    %v1483 = vstv %s1482
    %v1484 = vmul.f32 %v1046, %v1483
    %v1485 = vmul.f32 %v1061, %v1483
    %s1486 = sld [smem:[#allocation2 + $0x70]]
    %v1487 = vstv %s1486
    %v1488 = vmul.f32 %v1116, %v1487
    %v1489 = vmul.f32 %v1131, %v1487
    %v1490 = vadd.f32 %v1484, %v1488
    %v1491 = vadd.f32 %v1485, %v1489
    %s1492 = sld [smem:[#allocation2 + $0x75]]
    %v1493 = vstv %s1492
    %v1494 = vmul.f32 %v1186, %v1493
    %v1495 = vmul.f32 %v1201, %v1493
    %v1496 = vadd.f32 %v1490, %v1494
    %v1497 = vadd.f32 %v1491, %v1495
    %s1498 = sld [smem:[#allocation2 + $0x7a]]
    %v1499 = vstv %s1498
    %v1500 = vmul.f32 %v1256, %v1499
    %v1501 = vmul.f32 %v1271, %v1499
    %v1502 = vadd.f32 %v1496, %v1500
    %v1503 = vadd.f32 %v1497, %v1501
    %s1504 = sld [smem:[#allocation2 + $0x7f]]
    %v1505 = vstv %s1504
    %v1506 = vmul.f32 %v1326, %v1505
    %v1507 = vmul.f32 %v1341, %v1505
    %v1508 = vadd.f32 %v1502, %v1506
    %v1509 = vadd.f32 %v1503, %v1507
    %s1510 = sld [smem:[#allocation2 + $0x84]]
    %v1511 = vstv %s1510
    %v1512 = vadd.f32 %v1508, %v1511
    %v1513 = vadd.f32 %v1509, %v1511
    %v1514 = vsub.f32 0.0, %v1512
    %v1515 = vsub.f32 0.0, %v1513
    %v1516 = vmul.f32 %v1514, 1.442695
    %v1517 = vpow.pop %v1516
    %v1518 = vmul.f32 %v1515, 1.442695
    %v1519 = vpow.pop %v1518
    %v1520 = vadd.f32 %v1517, 1.0
    %v1521 = vadd.f32 %v1519, 1.0
    %v1522 = vrcp.pop %v1520
    %v1523 = vmul.f32 %v1520, %v1522
    %v1524 = vsub.f32 1.0, %v1523
    %v1525 = vmul.f32 %v1522, %v1524
    %v1526 = vadd.f32 %v1522, %v1525
    %vm1527 = vweird.f32 %v1520
    %vm1528 = vweird.f32 %v1522
    %vm1529 = vmor %vm1527, %vm1528
    %v1530 = vsel %vm1529, %v1522, %v1526
    %v1531 = vand.u32 2147483647, %v1520
    %vm1532 = vcmp.eq.f32.partialorder %v1531, 8.507059e+37
    %v1533 = vand.u32 %v1520, 2147483648
    %v1534 = vor.u32 1.1754944e-38, %v1533
    %v1535 = vsel %vm1532, %v1534, %v1530
    %v1536 = vmul.f32 1.0, %v1535
    %v1537 = vrcp.pop %v1521
    %v1538 = vmul.f32 %v1521, %v1537
    %v1539 = vsub.f32 1.0, %v1538
    %v1540 = vmul.f32 %v1537, %v1539
    %v1541 = vadd.f32 %v1537, %v1540
    %vm1542 = vweird.f32 %v1521
    %vm1543 = vweird.f32 %v1537
    %vm1544 = vmor %vm1542, %vm1543
    %v1545 = vsel %vm1544, %v1537, %v1541
    %v1546 = vand.u32 2147483647, %v1521
    %vm1547 = vcmp.eq.f32.partialorder %v1546, 8.507059e+37
    %v1548 = vand.u32 %v1521, 2147483648
    %v1549 = vor.u32 1.1754944e-38, %v1548
    %v1550 = vsel %vm1547, %v1549, %v1545
    %v1551 = vmul.f32 1.0, %v1550
    %s1552 = sld [smem:[#allocation2 + $0x6c]]
    %v1553 = vstv %s1552
    %v1554 = vmul.f32 %v1046, %v1553
    %v1555 = vmul.f32 %v1061, %v1553
    %s1556 = sld [smem:[#allocation2 + $0x71]]
    %v1557 = vstv %s1556
    %v1558 = vmul.f32 %v1116, %v1557
    %v1559 = vmul.f32 %v1131, %v1557
    %v1560 = vadd.f32 %v1554, %v1558
    %v1561 = vadd.f32 %v1555, %v1559
    %s1562 = sld [smem:[#allocation2 + $0x76]]
    %v1563 = vstv %s1562
    %v1564 = vmul.f32 %v1186, %v1563
    %v1565 = vmul.f32 %v1201, %v1563
    %v1566 = vadd.f32 %v1560, %v1564
    %v1567 = vadd.f32 %v1561, %v1565
    %s1568 = sld [smem:[#allocation2 + $0x7b]]
    %v1569 = vstv %s1568
    %v1570 = vmul.f32 %v1256, %v1569
    %v1571 = vmul.f32 %v1271, %v1569
    %v1572 = vadd.f32 %v1566, %v1570
    %v1573 = vadd.f32 %v1567, %v1571
    %s1574 = sld [smem:[#allocation2 + $0x80]]
    %v1575 = vstv %s1574
    %v1576 = vmul.f32 %v1326, %v1575
    %v1577 = vmul.f32 %v1341, %v1575
    %v1578 = vadd.f32 %v1572, %v1576
    %v1579 = vadd.f32 %v1573, %v1577
    %s1580 = sld [smem:[#allocation2 + $0x85]]
    %v1581 = vstv %s1580
    %v1582 = vadd.f32 %v1578, %v1581
    %v1583 = vadd.f32 %v1579, %v1581
    %v1584 = vsub.f32 0.0, %v1582
    %v1585 = vsub.f32 0.0, %v1583
    %v1586 = vmul.f32 %v1584, 1.442695
    %v1587 = vpow.pop %v1586
    %v1588 = vmul.f32 %v1585, 1.442695
    %v1589 = vpow.pop %v1588
    %v1590 = vadd.f32 %v1587, 1.0
    %v1591 = vadd.f32 %v1589, 1.0
    %v1592 = vrcp.pop %v1590
    %v1593 = vmul.f32 %v1590, %v1592
    %v1594 = vsub.f32 1.0, %v1593
    %v1595 = vmul.f32 %v1592, %v1594
    %v1596 = vadd.f32 %v1592, %v1595
    %vm1597 = vweird.f32 %v1590
    %vm1598 = vweird.f32 %v1592
    %vm1599 = vmor %vm1597, %vm1598
    %v1600 = vsel %vm1599, %v1592, %v1596
    %v1601 = vand.u32 2147483647, %v1590
    %vm1602 = vcmp.eq.f32.partialorder %v1601, 8.507059e+37
    %v1603 = vand.u32 %v1590, 2147483648
    %v1604 = vor.u32 1.1754944e-38, %v1603
    %v1605 = vsel %vm1602, %v1604, %v1600
    %v1606 = vmul.f32 1.0, %v1605
    %v1607 = vrcp.pop %v1591
    %v1608 = vmul.f32 %v1591, %v1607
    %v1609 = vsub.f32 1.0, %v1608
    %v1610 = vmul.f32 %v1607, %v1609
    %v1611 = vadd.f32 %v1607, %v1610
    %vm1612 = vweird.f32 %v1591
    %vm1613 = vweird.f32 %v1607
    %vm1614 = vmor %vm1612, %vm1613
    %v1615 = vsel %vm1614, %v1607, %v1611
    %v1616 = vand.u32 2147483647, %v1591
    %vm1617 = vcmp.eq.f32.partialorder %v1616, 8.507059e+37
    %v1618 = vand.u32 %v1591, 2147483648
    %v1619 = vor.u32 1.1754944e-38, %v1618
    %v1620 = vsel %vm1617, %v1619, %v1615
    %v1621 = vmul.f32 1.0, %v1620
    %s1622 = sld [smem:[#allocation2 + $0x6d]]
    %v1623 = vstv %s1622
    %v1624 = vmul.f32 %v1046, %v1623
    %v1625 = vmul.f32 %v1061, %v1623
    %s1626 = sld [smem:[#allocation2 + $0x72]]
    %v1627 = vstv %s1626
    %v1628 = vmul.f32 %v1116, %v1627
    %v1629 = vmul.f32 %v1131, %v1627
    %v1630 = vadd.f32 %v1624, %v1628
    %v1631 = vadd.f32 %v1625, %v1629
    %s1632 = sld [smem:[#allocation2 + $0x77]]
    %v1633 = vstv %s1632
    %v1634 = vmul.f32 %v1186, %v1633
    %v1635 = vmul.f32 %v1201, %v1633
    %v1636 = vadd.f32 %v1630, %v1634
    %v1637 = vadd.f32 %v1631, %v1635
    %s1638 = sld [smem:[#allocation2 + $0x7c]]
    %v1639 = vstv %s1638
    %v1640 = vmul.f32 %v1256, %v1639
    %v1641 = vmul.f32 %v1271, %v1639
    %v1642 = vadd.f32 %v1636, %v1640
    %v1643 = vadd.f32 %v1637, %v1641
    %s1644 = sld [smem:[#allocation2 + $0x81]]
    %v1645 = vstv %s1644
    %v1646 = vmul.f32 %v1326, %v1645
    %v1647 = vmul.f32 %v1341, %v1645
    %v1648 = vadd.f32 %v1642, %v1646
    %v1649 = vadd.f32 %v1643, %v1647
    %s1650 = sld [smem:[#allocation2 + $0x86]]
    %v1651 = vstv %s1650
    %v1652 = vadd.f32 %v1648, %v1651
    %v1653 = vadd.f32 %v1649, %v1651
    %v1654 = vsub.f32 0.0, %v1652
    %v1655 = vsub.f32 0.0, %v1653
    %v1656 = vmul.f32 %v1654, 1.442695
    %v1657 = vpow.pop %v1656
    %v1658 = vmul.f32 %v1655, 1.442695
    %v1659 = vpow.pop %v1658
    %v1660 = vadd.f32 %v1657, 1.0
    %v1661 = vadd.f32 %v1659, 1.0
    %v1662 = vrcp.pop %v1660
    %v1663 = vmul.f32 %v1660, %v1662
    %v1664 = vsub.f32 1.0, %v1663
    %v1665 = vmul.f32 %v1662, %v1664
    %v1666 = vadd.f32 %v1662, %v1665
    %vm1667 = vweird.f32 %v1660
    %vm1668 = vweird.f32 %v1662
    %vm1669 = vmor %vm1667, %vm1668
    %v1670 = vsel %vm1669, %v1662, %v1666
    %v1671 = vand.u32 2147483647, %v1660
    %vm1672 = vcmp.eq.f32.partialorder %v1671, 8.507059e+37
    %v1673 = vand.u32 %v1660, 2147483648
    %v1674 = vor.u32 1.1754944e-38, %v1673
    %v1675 = vsel %vm1672, %v1674, %v1670
    %v1676 = vmul.f32 1.0, %v1675
    %v1677 = vrcp.pop %v1661
    %v1678 = vmul.f32 %v1661, %v1677
    %v1679 = vsub.f32 1.0, %v1678
    %v1680 = vmul.f32 %v1677, %v1679
    %v1681 = vadd.f32 %v1677, %v1680
    %vm1682 = vweird.f32 %v1661
    %vm1683 = vweird.f32 %v1677
    %vm1684 = vmor %vm1682, %vm1683
    %v1685 = vsel %vm1684, %v1677, %v1681
    %v1686 = vand.u32 2147483647, %v1661
    %vm1687 = vcmp.eq.f32.partialorder %v1686, 8.507059e+37
    %v1688 = vand.u32 %v1661, 2147483648
    %v1689 = vor.u32 1.1754944e-38, %v1688
    %v1690 = vsel %vm1687, %v1689, %v1685
    %v1691 = vmul.f32 1.0, %v1690
    %s1692 = sld [smem:[#allocation2 + $0x87]]
    %v1693 = vstv %s1692
    %v1694 = vmul.f32 %v1396, %v1693
    %v1695 = vmul.f32 %v1411, %v1693
    %s1696 = sld [smem:[#allocation2 + $0x88]]
    %v1697 = vstv %s1696
    %v1698 = vmul.f32 %v1466, %v1697
    %v1699 = vmul.f32 %v1481, %v1697
    %v1700 = vadd.f32 %v1694, %v1698
    %v1701 = vadd.f32 %v1695, %v1699
    %s1702 = sld [smem:[#allocation2 + $0x89]]
    %v1703 = vstv %s1702
    %v1704 = vmul.f32 %v1536, %v1703
    %v1705 = vmul.f32 %v1551, %v1703
    %v1706 = vadd.f32 %v1700, %v1704
    %v1707 = vadd.f32 %v1701, %v1705
    %s1708 = sld [smem:[#allocation2 + $0x8a]]
    %v1709 = vstv %s1708
    %v1710 = vmul.f32 %v1606, %v1709
    %v1711 = vmul.f32 %v1621, %v1709
    %v1712 = vadd.f32 %v1706, %v1710
    %v1713 = vadd.f32 %v1707, %v1711
    %s1714 = sld [smem:[#allocation2 + $0x8b]]
    %v1715 = vstv %s1714
    %v1716 = vmul.f32 %v1676, %v1715
    %v1717 = vmul.f32 %v1691, %v1715
    %v1718 = vadd.f32 %v1712, %v1716
    %v1719 = vadd.f32 %v1713, %v1717
    %s1720 = sld [smem:[#allocation2 + $0x8c]]
    %v1721 = vstv %s1720
    %v1722 = vadd.f32 %v1718, %v1721
    %v1723 = vadd.f32 %v1719, %v1721
    %1724 = vst [vmem:[#allocation5] sm:$0xff] %v1722
    %1725 = vst [vmem:[#allocation5 + $0x8] sm:$0xff] %v1723
    // Predicated region
    $region18: #{pinn_forward.1} parent=1 // pred_check
      _
    $region19: #{pinn_forward.1} parent=1 // pred_check_branch
      %1727 = sbr.rel (0) target = $region21
    $region20: #{pinn_forward.1} parent=1 // pred_region
      %1729 = vsyncadd [#allocation3], 0
      %s1730 = sshll.u32 [#allocation5], 4
      %s1731 = int_to_ptr.vmem [resolvable:$true] %s1730
      %s1732 = sshll.u32 %s3, 4
      %s1733 = int_to_ptr.hbm [resolvable:$true] %s1732
      %1738 = dma.vmem_to_hbm [thread:$0]  %s1731, 256, %s1733, [#allocation3], 128, 128, 8
    $region21: #{pinn_forward.1} parent=1 // pred_fallthru
      _
    // Predicated region
    $region22: #{pinn_forward.1} parent=1 // pred_check
      _
    $region23: #{pinn_forward.1} parent=1 // pred_check_branch
      %1740 = sbr.rel (0) target = $region25
    $region24: #{pinn_forward.1} parent=1 // pred_region
      %1742 = dma.done [#allocation3], 256
    $region25: #{pinn_forward.1} parent=1 // pred_fallthru
      _
    %1743 = vsyncpa [#allocation3], 1
    %1744 = vsyncpa [#allocation4], 1

</llo_original>
